<compile_context>
chip_gen: v5e
topology: v5e:2x2
jax: 0.10.0
libtpu: 0.0.40
codegen_flags: <defaults>
</compile_context>

<pallas_src>
import jax
import jax.numpy as jnp
from jax.experimental import pallas as pl
from jax.experimental.pallas import tpu as pltpu

EPS = 1e-5
LANE = 128  # output-channel tile (one MXU width; 256 is also good on v6e/v7x)


# --------------------------------------------------------------------------- kernel
def repvgg_kernel(x_ref, w_ref, b_ref, o_ref):
    """Fused (re-parameterized) RepVGG block for one (image, out-channel tile).

    x_ref : (1, H+2, W+2, Cin)  bf16  zero-padded input image (halo = 1)
    w_ref : (3, 3, Cin, TN)     bf16  re-parameterized 3x3 weight tile
    b_ref : (1, TN)             f32   folded bias tile
    o_ref : (1, H*W, TN)        f32   output tile (reshaped to NHWC in glue)
    """
    _, Hp, Wp, Cin = x_ref.shape
    H, W = Hp - 2, Wp - 2
    TN = o_ref.shape[-1]

    # One upcast of the whole halo block; the 9 per-tap slices are then plain f32
    # slices (avoids unaligned packed-bf16 sublane extraction) and are recast to bf16
    # right at the MXU so the matmuls run as native bf16 with f32 accumulation.
    xv = x_ref[0].astype(jnp.float32)                     # (H+2, W+2, Cin)

    acc = jnp.zeros((H * W, TN), jnp.float32)
    for ky in range(3):                                   # stride 1, pad 1
        for kx in range(3):
            patch = xv[ky:ky + H, kx:kx + W, :].reshape(H * W, Cin)
            acc = acc + jnp.dot(patch.astype(jnp.bfloat16), w_ref[ky, kx],
                                preferred_element_type=jnp.float32)

    acc = acc + b_ref[...]                                # single folded bias
    o_ref[...] = jnp.maximum(acc, 0.0).reshape(1, H * W, TN).astype(o_ref.dtype)


# ----------------------------------------------------------------------------- glue
def _fold_bn(gamma, beta, mean, var):
    scale = gamma / jnp.sqrt(var + EPS)
    return scale, beta - mean * scale


def reparam(params):
    """RepVGG deploy transform (eval-mode BN): fold all branches into one 3x3 + bias."""
    w3 = params["w3"]                                     # (3, 3, Cin, Cout)
    cin, cout = w3.shape[2], w3.shape[3]
    s3, b3 = _fold_bn(*params["bn3"])
    s1, b1 = _fold_bn(*params["bn1"])
    w = w3 * s3                                           # fold BN3 scale
    w = w.at[1, 1].add(params["w1"] * s1)                 # 1x1 branch -> centre tap
    b = b3 + b1
    if cin == cout and "bnid" in params:                  # identity branch (stride==1)
        sid, bid = _fold_bn(*params["bnid"])
        w = w.at[1, 1].add(jnp.diag(sid).astype(w.dtype))
        b = b + bid
    return w, b


def repvgg_block_forward(x_nhwc, params):
    """Fold BN + re-parameterize in glue, run the fused Pallas kernel."""
    B, H, W, Cin = x_nhwc.shape
    Cout = params["w3"].shape[-1]

    w_rep, bias = reparam(params)                         # f32

    # Lane-dense output: pad Cout to a multiple of 128 (no-op for realistic channels).
    TN = LANE
    Cout_p = ((Cout + TN - 1) // TN) * TN
    if Cout_p != Cout:
        w_rep = jnp.pad(w_rep, ((0, 0), (0, 0), (0, 0), (0, Cout_p - Cout)))
        bias = jnp.pad(bias, (0, Cout_p - Cout))

    # 1-px halo pad + bf16 cast of the activation stream (one fused XLA op).
    # TODO(synk): fuse the halo pad into the kernel (in-VMEM halo scratch / masked edge
    #             row-tiles) to remove this extra HBM pass over the activations.
    # TODO(synk): for large H*W add a row-tile grid axis (Element-indexed halo blocks)
    #             so the f32 accumulator stays ~256x128.
    xpad = jnp.pad(x_nhwc, ((0, 0), (1, 1), (1, 1), (0, 0))).astype(jnp.bfloat16)

    out = pl.pallas_call(
        repvgg_kernel,
        out_shape=jax.ShapeDtypeStruct((B, H * W, Cout_p), jnp.float32),
        grid_spec=pltpu.PrefetchScalarGridSpec(
            num_scalar_prefetch=0,
            grid=(B, Cout_p // TN),
            in_specs=[
                # one image incl. halo; re-used across all out-channel tiles
                pl.BlockSpec((1, H + 2, W + 2, Cin), lambda b, n: (b, 0, 0, 0)),
                # re-parameterized weights / bias: constant in b -> VMEM-resident
                pl.BlockSpec((3, 3, Cin, TN), lambda b, n: (0, 0, 0, n)),
                pl.BlockSpec((1, TN), lambda b, n: (0, n)),
            ],
            out_specs=pl.BlockSpec((1, H * W, TN), lambda b, n: (b, 0, n)),
        ),
        compiler_params=pltpu.CompilerParams(
            dimension_semantics=("parallel", "parallel"),   # megacore on v7x
            vmem_limit_bytes=32 * 1024 * 1024,              # safe on v5e/v6e/v7x
        ),
    )(xpad,
      w_rep.astype(jnp.bfloat16),
      bias.reshape(1, Cout_p).astype(jnp.float32))

    out = out.reshape(B, H, W, Cout_p)
    return out[..., :Cout] if Cout_p != Cout else out


# ------------------------------------------------------------------------ references
def ref_forward(x_nhwc, params):
    """Plain-JAX reference: the original three explicit branches, eval-mode BN, f32."""
    dn = ("NHWC", "HWIO", "NHWC")

    def bn(y, g, b, m, v):
        return (y - m) / jnp.sqrt(v + EPS) * g + b

    dense = jax.lax.conv_general_dilated(
        x_nhwc, params["w3"], (1, 1), ((1, 1), (1, 1)), dimension_numbers=dn)
    dense = bn(dense, *params["bn3"])
    one = jax.lax.conv_general_dilated(
        x_nhwc, params["w1"][None, None], (1, 1), ((0, 0), (0, 0)),
        dimension_numbers=dn)
    one = bn(one, *params["bn1"])
    ident = bn(x_nhwc, *params["bnid"])
    return jax.nn.relu(dense + one + ident)


def init_params(key, cin, cout):
    ks = jax.random.split(key, 5)

    def bn_params(k, c):
        k0, k1, k2, k3 = jax.random.split(k, 4)
        gamma = jax.random.uniform(k0, (c,), jnp.float32, 0.5, 1.5)
        beta = jax.random.normal(k1, (c,), jnp.float32) * 0.1
        mean = jax.random.normal(k2, (c,), jnp.float32) * 0.1
        var = jax.random.uniform(k3, (c,), jnp.float32, 0.5, 1.5)
        return (gamma, beta, mean, var)

    return {
        "w3": jax.random.normal(ks[0], (3, 3, cin, cout), jnp.float32) * 0.1,
        "w1": jax.random.normal(ks[1], (cin, cout), jnp.float32) * 0.1,
        "bn3": bn_params(ks[2], cout),
        "bn1": bn_params(ks[3], cout),
        "bnid": bn_params(ks[4], cin),
    }


if __name__ == "__main__":
    B, C, H, W = 2, 4, 16, 16  # RepVGGBlock(in_channels=4, out_channels=4)

    key = jax.random.PRNGKey(0)
    k_x, k_p = jax.random.split(key)
    x_nchw = jax.random.normal(k_x, (B, C, H, W), jnp.float32)  # PyTorch-style input
    params = init_params(k_p, C, C)

    x_nhwc = jnp.transpose(x_nchw, (0, 2, 3, 1))

    out = jax.block_until_ready(repvgg_block_forward(x_nhwc, params))
    assert out.shape == (B, H, W, C)

    # (1) Exact-math check: same bf16-quantized re-parameterized weights, plain-JAX conv.
    w_rep, bias = reparam(params)
    xq = x_nhwc.astype(jnp.bfloat16).astype(jnp.float32)
    wq = w_rep.astype(jnp.bfloat16).astype(jnp.float32)
    ref_exact = jax.nn.relu(
        jax.lax.conv_general_dilated(
            xq, wq, (1, 1), ((1, 1), (1, 1)),
            dimension_numbers=("NHWC", "HWIO", "NHWC")) + bias)
    assert jnp.allclose(out, ref_exact, rtol=1e-4, atol=1e-4), \
        float(jnp.max(jnp.abs(out - ref_exact)))

    # (2) Semantics check vs the original three-branch f32 module; tolerance loosened
    #     only for the bf16 quantization of the matmul operands (accumulation is f32).
    ref = ref_forward(x_nhwc, params)
    assert jnp.allclose(out, ref, rtol=5e-2, atol=1e-1), \
        float(jnp.max(jnp.abs(out - ref)))

    print("KERNEL_OK")
</pallas_src>

<mosaic_0001>
module attributes {stable_mosaic.version = 11 : i64} {
  func.func @repvgg_kernel(%arg0: i32, %arg1: i32, %arg2: memref<1x18x18x4xbf16, #tpu.memory_space<vmem>>, %arg3: memref<3x3x4x128xbf16, #tpu.memory_space<vmem>>, %arg4: memref<1x128xf32, #tpu.memory_space<vmem>>, %arg5: memref<1x256x128xf32, #tpu.memory_space<vmem>>) attributes {dimension_semantics = [#tpu.dimension_semantics<parallel>, #tpu.dimension_semantics<parallel>], iteration_bounds = array<i64: 2, 1>, scalar_prefetch = 0 : i64, scratch_operands = 0 : i64, tpu.core_type = #tpu.core_type<tc>, window_params = [{transform_indices = @transform_0, window_bounds = array<i64: 1, 18, 18, 4>}, {transform_indices = @transform_1, window_bounds = array<i64: 3, 3, 4, 128>}, {transform_indices = @transform_2, window_bounds = array<i64: 1, 128>}, {transform_indices = @transform_3, window_bounds = array<i64: 1, 256, 128>}]} {
    %c0 = arith.constant 0 : index
    %c0_0 = arith.constant 0 : index
    %c0_1 = arith.constant 0 : index
    %c0_2 = arith.constant 0 : index
    %0 = vector.load %arg2[%c0, %c0_0, %c0_1, %c0_2] : memref<1x18x18x4xbf16, #tpu.memory_space<vmem>>, vector<1x18x18x4xbf16>
    %1 = vector.shape_cast %0 : vector<1x18x18x4xbf16> to vector<18x18x4xbf16>
    %2 = arith.extf %1 : vector<18x18x4xbf16> to vector<18x18x4xf32>
    %cst = arith.constant 0.000000e+00 : f32
    %3 = vector.broadcast %cst : f32 to vector<256x128xf32>
    %4 = vector.extract_strided_slice %2 {offsets = [0, 0, 0], sizes = [16, 16, 4], strides = [1, 1, 1]} : vector<18x18x4xf32> to vector<16x16x4xf32>
    %5 = vector.shape_cast %4 : vector<16x16x4xf32> to vector<256x4xf32>
    %6 = arith.truncf %5 : vector<256x4xf32> to vector<256x4xbf16>
    %c0_3 = arith.constant 0 : index
    %c0_4 = arith.constant 0 : index
    %c0_5 = arith.constant 0 : index
    %c0_6 = arith.constant 0 : index
    %7 = vector.load %arg3[%c0_3, %c0_4, %c0_5, %c0_6] : memref<3x3x4x128xbf16, #tpu.memory_space<vmem>>, vector<1x1x4x128xbf16>
    %8 = vector.shape_cast %7 : vector<1x1x4x128xbf16> to vector<4x128xbf16>
    %cst_7 = arith.constant dense<0.000000e+00> : vector<256x128xf32>
    %9 = tpu.matmul %6, %8, %cst_7 {dimension_numbers = #tpu.dot_dimension_numbers<[1], [0], [0], [1], [0, 0, 1, 1], [], []>} : vector<256x4xbf16>, vector<4x128xbf16>, vector<256x128xf32> -> vector<256x128xf32>
    %10 = arith.addf %3, %9 : vector<256x128xf32>
    %11 = vector.extract_strided_slice %2 {offsets = [0, 1, 0], sizes = [16, 16, 4], strides = [1, 1, 1]} : vector<18x18x4xf32> to vector<16x16x4xf32>
    %12 = vector.shape_cast %11 : vector<16x16x4xf32> to vector<256x4xf32>
    %13 = arith.truncf %12 : vector<256x4xf32> to vector<256x4xbf16>
    %c0_8 = arith.constant 0 : index
    %c1 = arith.constant 1 : index
    %c0_9 = arith.constant 0 : index
    %c0_10 = arith.constant 0 : index
    %14 = vector.load %arg3[%c0_8, %c1, %c0_9, %c0_10] : memref<3x3x4x128xbf16, #tpu.memory_space<vmem>>, vector<1x1x4x128xbf16>
    %15 = vector.shape_cast %14 : vector<1x1x4x128xbf16> to vector<4x128xbf16>
    %cst_11 = arith.constant dense<0.000000e+00> : vector<256x128xf32>
    %16 = tpu.matmul %13, %15, %cst_11 {dimension_numbers = #tpu.dot_dimension_numbers<[1], [0], [0], [1], [0, 0, 1, 1], [], []>} : vector<256x4xbf16>, vector<4x128xbf16>, vector<256x128xf32> -> vector<256x128xf32>
    %17 = arith.addf %10, %16 : vector<256x128xf32>
    %18 = vector.extract_strided_slice %2 {offsets = [0, 2, 0], sizes = [16, 16, 4], strides = [1, 1, 1]} : vector<18x18x4xf32> to vector<16x16x4xf32>
    %19 = vector.shape_cast %18 : vector<16x16x4xf32> to vector<256x4xf32>
    %20 = arith.truncf %19 : vector<256x4xf32> to vector<256x4xbf16>
    %c0_12 = arith.constant 0 : index
    %c2 = arith.constant 2 : index
    %c0_13 = arith.constant 0 : index
    %c0_14 = arith.constant 0 : index
    %21 = vector.load %arg3[%c0_12, %c2, %c0_13, %c0_14] : memref<3x3x4x128xbf16, #tpu.memory_space<vmem>>, vector<1x1x4x128xbf16>
    %22 = vector.shape_cast %21 : vector<1x1x4x128xbf16> to vector<4x128xbf16>
    %cst_15 = arith.constant dense<0.000000e+00> : vector<256x128xf32>
    %23 = tpu.matmul %20, %22, %cst_15 {dimension_numbers = #tpu.dot_dimension_numbers<[1], [0], [0], [1], [0, 0, 1, 1], [], []>} : vector<256x4xbf16>, vector<4x128xbf16>, vector<256x128xf32> -> vector<256x128xf32>
    %24 = arith.addf %17, %23 : vector<256x128xf32>
    %25 = vector.extract_strided_slice %2 {offsets = [1, 0, 0], sizes = [16, 16, 4], strides = [1, 1, 1]} : vector<18x18x4xf32> to vector<16x16x4xf32>
    %26 = vector.shape_cast %25 : vector<16x16x4xf32> to vector<256x4xf32>
    %27 = arith.truncf %26 : vector<256x4xf32> to vector<256x4xbf16>
    %c1_16 = arith.constant 1 : index
    %c0_17 = arith.constant 0 : index
    %c0_18 = arith.constant 0 : index
    %c0_19 = arith.constant 0 : index
    %28 = vector.load %arg3[%c1_16, %c0_17, %c0_18, %c0_19] : memref<3x3x4x128xbf16, #tpu.memory_space<vmem>>, vector<1x1x4x128xbf16>
    %29 = vector.shape_cast %28 : vector<1x1x4x128xbf16> to vector<4x128xbf16>
    %cst_20 = arith.constant dense<0.000000e+00> : vector<256x128xf32>
    %30 = tpu.matmul %27, %29, %cst_20 {dimension_numbers = #tpu.dot_dimension_numbers<[1], [0], [0], [1], [0, 0, 1, 1], [], []>} : vector<256x4xbf16>, vector<4x128xbf16>, vector<256x128xf32> -> vector<256x128xf32>
    %31 = arith.addf %24, %30 : vector<256x128xf32>
    %32 = vector.extract_strided_slice %2 {offsets = [1, 1, 0], sizes = [16, 16, 4], strides = [1, 1, 1]} : vector<18x18x4xf32> to vector<16x16x4xf32>
    %33 = vector.shape_cast %32 : vector<16x16x4xf32> to vector<256x4xf32>
    %34 = arith.truncf %33 : vector<256x4xf32> to vector<256x4xbf16>
    %c1_21 = arith.constant 1 : index
    %c1_22 = arith.constant 1 : index
    %c0_23 = arith.constant 0 : index
    %c0_24 = arith.constant 0 : index
    %35 = vector.load %arg3[%c1_21, %c1_22, %c0_23, %c0_24] : memref<3x3x4x128xbf16, #tpu.memory_space<vmem>>, vector<1x1x4x128xbf16>
    %36 = vector.shape_cast %35 : vector<1x1x4x128xbf16> to vector<4x128xbf16>
    %cst_25 = arith.constant dense<0.000000e+00> : vector<256x128xf32>
    %37 = tpu.matmul %34, %36, %cst_25 {dimension_numbers = #tpu.dot_dimension_numbers<[1], [0], [0], [1], [0, 0, 1, 1], [], []>} : vector<256x4xbf16>, vector<4x128xbf16>, vector<256x128xf32> -> vector<256x128xf32>
    %38 = arith.addf %31, %37 : vector<256x128xf32>
    %39 = vector.extract_strided_slice %2 {offsets = [1, 2, 0], sizes = [16, 16, 4], strides = [1, 1, 1]} : vector<18x18x4xf32> to vector<16x16x4xf32>
    %40 = vector.shape_cast %39 : vector<16x16x4xf32> to vector<256x4xf32>
    %41 = arith.truncf %40 : vector<256x4xf32> to vector<256x4xbf16>
    %c1_26 = arith.constant 1 : index
    %c2_27 = arith.constant 2 : index
    %c0_28 = arith.constant 0 : index
    %c0_29 = arith.constant 0 : index
    %42 = vector.load %arg3[%c1_26, %c2_27, %c0_28, %c0_29] : memref<3x3x4x128xbf16, #tpu.memory_space<vmem>>, vector<1x1x4x128xbf16>
    %43 = vector.shape_cast %42 : vector<1x1x4x128xbf16> to vector<4x128xbf16>
    %cst_30 = arith.constant dense<0.000000e+00> : vector<256x128xf32>
    %44 = tpu.matmul %41, %43, %cst_30 {dimension_numbers = #tpu.dot_dimension_numbers<[1], [0], [0], [1], [0, 0, 1, 1], [], []>} : vector<256x4xbf16>, vector<4x128xbf16>, vector<256x128xf32> -> vector<256x128xf32>
    %45 = arith.addf %38, %44 : vector<256x128xf32>
    %46 = vector.extract_strided_slice %2 {offsets = [2, 0, 0], sizes = [16, 16, 4], strides = [1, 1, 1]} : vector<18x18x4xf32> to vector<16x16x4xf32>
    %47 = vector.shape_cast %46 : vector<16x16x4xf32> to vector<256x4xf32>
    %48 = arith.truncf %47 : vector<256x4xf32> to vector<256x4xbf16>
    %c2_31 = arith.constant 2 : index
    %c0_32 = arith.constant 0 : index
    %c0_33 = arith.constant 0 : index
    %c0_34 = arith.constant 0 : index
    %49 = vector.load %arg3[%c2_31, %c0_32, %c0_33, %c0_34] : memref<3x3x4x128xbf16, #tpu.memory_space<vmem>>, vector<1x1x4x128xbf16>
    %50 = vector.shape_cast %49 : vector<1x1x4x128xbf16> to vector<4x128xbf16>
    %cst_35 = arith.constant dense<0.000000e+00> : vector<256x128xf32>
    %51 = tpu.matmul %48, %50, %cst_35 {dimension_numbers = #tpu.dot_dimension_numbers<[1], [0], [0], [1], [0, 0, 1, 1], [], []>} : vector<256x4xbf16>, vector<4x128xbf16>, vector<256x128xf32> -> vector<256x128xf32>
    %52 = arith.addf %45, %51 : vector<256x128xf32>
    %53 = vector.extract_strided_slice %2 {offsets = [2, 1, 0], sizes = [16, 16, 4], strides = [1, 1, 1]} : vector<18x18x4xf32> to vector<16x16x4xf32>
    %54 = vector.shape_cast %53 : vector<16x16x4xf32> to vector<256x4xf32>
    %55 = arith.truncf %54 : vector<256x4xf32> to vector<256x4xbf16>
    %c2_36 = arith.constant 2 : index
    %c1_37 = arith.constant 1 : index
    %c0_38 = arith.constant 0 : index
    %c0_39 = arith.constant 0 : index
    %56 = vector.load %arg3[%c2_36, %c1_37, %c0_38, %c0_39] : memref<3x3x4x128xbf16, #tpu.memory_space<vmem>>, vector<1x1x4x128xbf16>
    %57 = vector.shape_cast %56 : vector<1x1x4x128xbf16> to vector<4x128xbf16>
    %cst_40 = arith.constant dense<0.000000e+00> : vector<256x128xf32>
    %58 = tpu.matmul %55, %57, %cst_40 {dimension_numbers = #tpu.dot_dimension_numbers<[1], [0], [0], [1], [0, 0, 1, 1], [], []>} : vector<256x4xbf16>, vector<4x128xbf16>, vector<256x128xf32> -> vector<256x128xf32>
    %59 = arith.addf %52, %58 : vector<256x128xf32>
    %60 = vector.extract_strided_slice %2 {offsets = [2, 2, 0], sizes = [16, 16, 4], strides = [1, 1, 1]} : vector<18x18x4xf32> to vector<16x16x4xf32>
    %61 = vector.shape_cast %60 : vector<16x16x4xf32> to vector<256x4xf32>
    %62 = arith.truncf %61 : vector<256x4xf32> to vector<256x4xbf16>
    %c2_41 = arith.constant 2 : index
    %c2_42 = arith.constant 2 : index
    %c0_43 = arith.constant 0 : index
    %c0_44 = arith.constant 0 : index
    %63 = vector.load %arg3[%c2_41, %c2_42, %c0_43, %c0_44] : memref<3x3x4x128xbf16, #tpu.memory_space<vmem>>, vector<1x1x4x128xbf16>
    %64 = vector.shape_cast %63 : vector<1x1x4x128xbf16> to vector<4x128xbf16>
    %cst_45 = arith.constant dense<0.000000e+00> : vector<256x128xf32>
    %65 = tpu.matmul %62, %64, %cst_45 {dimension_numbers = #tpu.dot_dimension_numbers<[1], [0], [0], [1], [0, 0, 1, 1], [], []>} : vector<256x4xbf16>, vector<4x128xbf16>, vector<256x128xf32> -> vector<256x128xf32>
    %66 = arith.addf %59, %65 : vector<256x128xf32>
    %c0_46 = arith.constant 0 : index
    %c0_47 = arith.constant 0 : index
    %67 = vector.load %arg4[%c0_46, %c0_47] : memref<1x128xf32, #tpu.memory_space<vmem>>, vector<1x128xf32>
    %68 = vector.broadcast %67 : vector<1x128xf32> to vector<256x128xf32>
    %69 = arith.addf %66, %68 : vector<256x128xf32>
    %cst_48 = arith.constant 0.000000e+00 : f32
    %70 = vector.broadcast %cst_48 : f32 to vector<256x128xf32>
    %71 = arith.maximumf %69, %70 : vector<256x128xf32>
    %72 = vector.shape_cast %71 : vector<256x128xf32> to vector<1x256x128xf32>
    %c0_49 = arith.constant 0 : index
    %c0_50 = arith.constant 0 : index
    %c0_51 = arith.constant 0 : index
    %73 = vector.load %arg5[%c0_49, %c0_50, %c0_51] : memref<1x256x128xf32, #tpu.memory_space<vmem>>, vector<1x256x128xf32>
    tpu.vector_store %arg5[%c0_49, %c0_50, %c0_51], %72 {strides = array<i32>} : memref<1x256x128xf32, #tpu.memory_space<vmem>>, vector<1x256x128xf32>,
    return
  }
  func.func @transform_0(%arg0: i32, %arg1: i32) -> (i32, i32, i32, i32) {
    %c0_i32 = arith.constant 0 : i32
    %c0_i32_0 = arith.constant 0 : i32
    %c0_i32_1 = arith.constant 0 : i32
    %c0_i32_2 = arith.constant 0 : i32
    return %arg0, %c0_i32, %c0_i32_0, %c0_i32_1 : i32, i32, i32, i32
  }
  func.func @transform_1(%arg0: i32, %arg1: i32) -> (i32, i32, i32, i32) {
    %c0_i32 = arith.constant 0 : i32
    %c0_i32_0 = arith.constant 0 : i32
    %c0_i32_1 = arith.constant 0 : i32
    %c0_i32_2 = arith.constant 0 : i32
    return %c0_i32, %c0_i32_0, %c0_i32_1, %arg1 : i32, i32, i32, i32
  }
  func.func @transform_2(%arg0: i32, %arg1: i32) -> (i32, i32) {
    %c0_i32 = arith.constant 0 : i32
    %c0_i32_0 = arith.constant 0 : i32
    return %c0_i32, %arg1 : i32, i32
  }
  func.func @transform_3(%arg0: i32, %arg1: i32) -> (i32, i32, i32) {
    %c0_i32 = arith.constant 0 : i32
    %c0_i32_0 = arith.constant 0 : i32
    return %arg0, %c0_i32, %arg1 : i32, i32, i32
  }
}

</mosaic_0001>

<llo_original>
// kernel: tpu_custom_call.1
$region0: #{tpu_custom_call.1}
  #allocation0 [shape = 'u32[]', space=smem, size = 0x4, offset = 0x4, fixed_abs, tag = 'smem constant byte address 0x4 - core index']
  #allocation1 [shape = 'u32[72,128]{1,0:T(1,128)}', space=vmem, size = 0x9000, scoped, tag = 'internal scratch']
  %s0 = inlined_call_operand.vmem [shape: bf16[2,18,18,4], index: 0, kind: input, shape index: {}]
  %s1 = inlined_call_operand.vmem [shape: bf16[3,3,4,128], index: 1, kind: input, shape index: {}]
  %s2 = inlined_call_operand.vmem [shape: f32[1,128], index: 2, kind: input, shape index: {}]
  %s3 = inlined_call_operand.hbm [shape: f32[2,256,128], index: 3, kind: output, shape index: {}]
  %s4 = sld [smem:[#allocation0]]
  $region45: #{tpu_custom_call.1} parent=0
    _
  %s6 = ssub.s32 1, %s4
  %s7 = scalar_select 0, %s6, %s4
  $region1: #{tpu_custom_call.1} parent=0
    #allocation2 [shape = 'u8[262144]{0}', space=vmem, size = 0x40000, scoped, tag = 'output window, operand 0']
    #allocation3 [shape = 's32[2]{0}', space=sflag, size = 0x8, scoped, tag = 'scoped memory for tpu_custom_call.1']
    %8 = vsyncpa [#allocation3], 0
    %s9 = scalar_lea.sflag [#allocation3], 1
    %10 = vsyncpa %s9, 0
    loop: start=0, step=1, limit=4
    $region2: #{tpu_custom_call.1} parent=1 // loop_pre_header
      _
    $region3: #{tpu_custom_call.1} parent=1 // loop_header
      %s12 = sphi 0, %s16
      %p13 = scmp.ge.s32.totalorder %s12, 4
      %s19 = sphi 0, %s31
      %s20 = sphi 0, %s27
      %s21 = sphi 0, %s19
      %s22 = sphi 0, %s20
      %s23 = sphi 0, %s21
      %s24 = sphi 0, %s22
      %s34 = sphi 0, %s36
      %s37 = sphi 0, %s34
      %s38 = sphi 0, %s37
      %s54 = sphi 0, %s38
      %s60 = sphi 0, %s62
      %s63 = sphi 0, %s60
      %s64 = sphi 0, %s63
      %s80 = sphi 0, %s64
      %s86 = sphi 0, %s88
      %s89 = sphi 0, %s86
      %s90 = sphi 0, %s89
      %s106 = sphi 0, %s90
      %s114 = sphi 0, %s116
      %s117 = sphi 0, %s114
      %s118 = sphi 0, %s117
      %s134 = sphi 0, %s118
    $region4: #{tpu_custom_call.1} parent=1 // loop_header_branch
      %15 = sbr.rel (%p13) target = $region8
    $region5: #{tpu_custom_call.1} parent=1 // loop_body
      %s17 = ssub.s32 %s12, 1
      %s18 = ssub.s32 %s12, 2
      %s25 = sadd.s32 1, %s20
      %p26 = scmp.ge.s32.totalorder %s25, 1
      %s27 = scalar_select %p26, 0, %s25
      %s28 = sadd.s32 1, %s19
      %s29 = scalar_select %p26, %s28, %s19
      %p30 = scmp.ge.s32.totalorder %s29, 2
      %s31 = scalar_select %p30, 0, %s29
      %s32 = ssub.s32 %s19, %s31
      %p33 = scmp.eq.s32.totalorder %s32, 0
      %s35 = sadd.s32 %s34, 1
      %s36 = scalar_select %p33, %s34, %s35
      %p39 = pneg %p33
      %p40 = scmp.eq.s32.totalorder %s12, 1
      %p41 = por %p39, %p40
      %p42 = scmp.ne.s32.totalorder %s34, %s37
      %p43 = scmp.eq.s32.totalorder %s12, 0
      %p44 = por %p42, %p43
      %p45 = scmp.ne.s32.totalorder %s34, %s37
      %p46 = scmp.eq.s32.totalorder %s17, 1
      %p47 = por %p45, %p46
      %p48 = scmp.ne.s32.totalorder %s37, %s38
      %p49 = scmp.eq.s32.totalorder %s17, 0
      %p50 = por %p48, %p49
      %p51 = scmp.ne.s32.totalorder %s37, %s38
      %p52 = scmp.eq.s32.totalorder %s18, 1
      %p53 = por %p51, %p52
      %p55 = scmp.ne.s32.totalorder %s38, %s54
      %p56 = scmp.eq.s32.totalorder %s18, 0
      %p57 = por %p55, %p56
      %s58 = ssub.s32 %s20, %s27
      %p59 = scmp.eq.s32.totalorder %s58, 0
      %s61 = sadd.s32 %s60, 1
      %s62 = scalar_select %p59, %s60, %s61
      %p65 = pneg %p59
      %p66 = scmp.eq.s32.totalorder %s12, 1
      %p67 = por %p65, %p66
      %p68 = scmp.ne.s32.totalorder %s60, %s63
      %p69 = scmp.eq.s32.totalorder %s12, 0
      %p70 = por %p68, %p69
      %p71 = scmp.ne.s32.totalorder %s60, %s63
      %p72 = scmp.eq.s32.totalorder %s17, 1
      %p73 = por %p71, %p72
      %p74 = scmp.ne.s32.totalorder %s63, %s64
      %p75 = scmp.eq.s32.totalorder %s17, 0
      %p76 = por %p74, %p75
      %p77 = scmp.ne.s32.totalorder %s63, %s64
      %p78 = scmp.eq.s32.totalorder %s18, 1
      %p79 = por %p77, %p78
      %p81 = scmp.ne.s32.totalorder %s64, %s80
      %p82 = scmp.eq.s32.totalorder %s18, 0
      %p83 = por %p81, %p82
      %s84 = ssub.s32 %s20, %s27
      %p85 = scmp.eq.s32.totalorder %s84, 0
      %s87 = sadd.s32 %s86, 1
      %s88 = scalar_select %p85, %s86, %s87
      %p91 = pneg %p85
      %p92 = scmp.eq.s32.totalorder %s12, 1
      %p93 = por %p91, %p92
      %p94 = scmp.ne.s32.totalorder %s86, %s89
      %p95 = scmp.eq.s32.totalorder %s12, 0
      %p96 = por %p94, %p95
      %p97 = scmp.ne.s32.totalorder %s86, %s89
      %p98 = scmp.eq.s32.totalorder %s17, 1
      %p99 = por %p97, %p98
      %p100 = scmp.ne.s32.totalorder %s89, %s90
      %p101 = scmp.eq.s32.totalorder %s17, 0
      %p102 = por %p100, %p101
      %p103 = scmp.ne.s32.totalorder %s89, %s90
      %p104 = scmp.eq.s32.totalorder %s18, 1
      %p105 = por %p103, %p104
      %p107 = scmp.ne.s32.totalorder %s90, %s106
      %p108 = scmp.eq.s32.totalorder %s18, 0
      %p109 = por %p107, %p108
      %s110 = ssub.s32 %s19, %s31
      %s111 = ssub.s32 %s20, %s27
      %s112 = sor.u32 %s110, %s111
      %p113 = scmp.eq.s32.totalorder %s112, 0
      %s115 = sadd.s32 %s114, 1
      %s116 = scalar_select %p113, %s114, %s115
      %p119 = pneg %p113
      %p120 = scmp.eq.s32.totalorder %s12, 1
      %p121 = por %p119, %p120
      %p122 = scmp.ne.s32.totalorder %s114, %s117
      %p123 = scmp.eq.s32.totalorder %s12, 0
      %p124 = por %p122, %p123
      %p125 = scmp.ne.s32.totalorder %s114, %s117
      %p126 = scmp.eq.s32.totalorder %s17, 1
      %p127 = por %p125, %p126
      %p128 = scmp.ne.s32.totalorder %s117, %s118
      %p129 = scmp.eq.s32.totalorder %s17, 0
      %p130 = por %p128, %p129
      %p131 = scmp.ne.s32.totalorder %s117, %s118
      %p132 = scmp.eq.s32.totalorder %s18, 1
      %p133 = por %p131, %p132
      %p135 = scmp.ne.s32.totalorder %s118, %s134
      %p136 = scmp.eq.s32.totalorder %s18, 0
      %p137 = por %p135, %p136
      %p138 = scmp.le.s32.totalorder 1, %s12
      %p139 = scmp.lt.s32.totalorder %s12, 3
      %p140 = pnand %p138, %p139
      %p141 = pneg %p140
      // Predicated region
      $region9: #{tpu_custom_call.1} parent=5 // pred_check
        _
      $region10: #{tpu_custom_call.1} parent=5 // pred_check_branch
        %143 = sbr.rel (%p140) target = $region12
      $region11: #{tpu_custom_call.1} parent=5 // pred_region
        %s144 = ssub.s32 %s12, 1
        // Predicated region
        $region13: #{tpu_custom_call.1} parent=11 // pred_check
          %p145 = pneg %p76
        $region14: #{tpu_custom_call.1} parent=11 // pred_check_branch
          %147 = sbr.rel (%p145) target = $region16
        $region15: #{tpu_custom_call.1} parent=11 // pred_region
          %p148 = scmp.lt.s32.totalorder %s22, 0
          %s149 = scalar_select %p148, %s22, 0
          %s150 = smul.addr %s149, 2
          %s151 = scalar_lea.vmem %s1, %s150
        $region16: #{tpu_custom_call.1} parent=11 // pred_fallthru
          _
        // Predicated region
        $region17: #{tpu_custom_call.1} parent=11 // pred_check
          %p152 = pneg %p102
        $region18: #{tpu_custom_call.1} parent=11 // pred_check_branch
          %154 = sbr.rel (%p152) target = $region20
        $region19: #{tpu_custom_call.1} parent=11 // pred_region
          %p155 = scmp.lt.s32.totalorder %s22, 0
          %s156 = scalar_select %p155, %s22, 0
          %s157 = scalar_lea.vmem %s2, %s156
        $region20: #{tpu_custom_call.1} parent=11 // pred_fallthru
          _
      $region12: #{tpu_custom_call.1} parent=5 // pred_fallthru
        _
      %p158 = scmp.lt.s32.totalorder %s12, 2
      // Predicated region
      $region21: #{tpu_custom_call.1} parent=5 // pred_check
        %p159 = pneg %p158
      $region22: #{tpu_custom_call.1} parent=5 // pred_check_branch
        %161 = sbr.rel (%p159) target = $region24
      $region23: #{tpu_custom_call.1} parent=5 // pred_region
        // Predicated region
        $region25: #{tpu_custom_call.1} parent=23 // pred_check
          %p162 = pneg %p44
        $region26: #{tpu_custom_call.1} parent=23 // pred_check_branch
          %164 = sbr.rel (%p162) target = $region28
        $region27: #{tpu_custom_call.1} parent=23 // pred_region
          %p165 = scmp.lt.s32.totalorder %s19, 1
          %s166 = scalar_select %p165, %s19, 1
          %s167 = smul.addr %s166, 54
          %s168 = smul.addr %s167, 4
          %s169 = scalar_lea.vmem %s0, %s168
        $region28: #{tpu_custom_call.1} parent=23 // pred_fallthru
          _
      $region24: #{tpu_custom_call.1} parent=5 // pred_fallthru
        _
      %p170 = scmp.le.s32.totalorder 1, %s12
      %p171 = scmp.lt.s32.totalorder %s12, 3
      %p172 = pnand %p170, %p171
      %p173 = pneg %p172
      // Predicated region
      $region29: #{tpu_custom_call.1} parent=5 // pred_check
        _
      $region30: #{tpu_custom_call.1} parent=5 // pred_check_branch
        %175 = sbr.rel (%p172) target = $region32
      $region31: #{tpu_custom_call.1} parent=5 // pred_region
        %s176 = ssub.s32 %s12, 1
        %p177 = scmp.lt.s32.totalorder %s21, 1
        %s178 = scalar_select %p177, %s21, 1
        %s179 = smul.addr %s178, 54
        %s180 = smul.addr %s179, 4
        %s181 = scalar_lea.vmem %s0, %s180
        %p182 = pneg %p50
        %p183 = pneg %p47
        %p184 = scmp.lt.s32.totalorder %s22, 0
        %s185 = scalar_select %p184, %s22, 0
        %s186 = smul.addr %s185, 2
        %s187 = scalar_lea.vmem %s1, %s186
        %p188 = pneg %p76
        %p189 = pneg %p73
        %p190 = scmp.lt.s32.totalorder %s22, 0
        %s191 = scalar_select %p190, %s22, 0
        %s192 = scalar_lea.vmem %s2, %s191
        %p193 = pneg %p102
        %p194 = pneg %p99
        %p195 = pneg %p130
        %p196 = pneg %p127
        %s197 = sand.u32 %s117, 1
        %s198 = scalar_lea.sflag [#allocation3], %s197
        %s199 = sand.u32 %s117, 1
        %s200 = smul.addr %s199, 256
        %s201 = scalar_lea.vmem [#allocation2], %s200
        %p202 = scmp.lt.s32.totalorder %s21, 1
        %s203 = scalar_select %p202, %s21, 1
        %s204 = smul.addr %s203, 54
        %s205 = smul.addr %s204, 4
        %s206 = scalar_lea.vmem %s0, %s205
        %p207 = scmp.lt.s32.totalorder %s22, 0
        %s208 = scalar_select %p207, %s22, 0
        %s209 = smul.addr %s208, 2
        %s210 = scalar_lea.vmem %s1, %s209
        %p211 = scmp.lt.s32.totalorder %s22, 0
        %s212 = scalar_select %p211, %s22, 0
        %s213 = scalar_lea.vmem %s2, %s212
        %v215 = vld [vmem:[%s206] sm:$0xf]
        %v216 = vld [vmem:[%s206 + $0x4] sm:$0xf]
        %v217 = vld [vmem:[%s206 + $0x8] sm:$0x1]
        %v218 = vld [vmem:[%s206 + $0xc] sm:$0xf]
        %v219 = vld [vmem:[%s206 + $0x10] sm:$0xf]
        %v220 = vld [vmem:[%s206 + $0x14] sm:$0x1]
        %v221 = vld [vmem:[%s206 + $0x18] sm:$0xf]
        %v222 = vld [vmem:[%s206 + $0x1c] sm:$0xf]
        %v223 = vld [vmem:[%s206 + $0x20] sm:$0x1]
        %v224 = vld [vmem:[%s206 + $0x24] sm:$0xf]
        %v225 = vld [vmem:[%s206 + $0x28] sm:$0xf]
        %v226 = vld [vmem:[%s206 + $0x2c] sm:$0x1]
        %v227 = vld [vmem:[%s206 + $0x30] sm:$0xf]
        %v228 = vld [vmem:[%s206 + $0x34] sm:$0xf]
        %v229 = vld [vmem:[%s206 + $0x38] sm:$0x1]
        %v230 = vld [vmem:[%s206 + $0x3c] sm:$0xf]
        %v231 = vld [vmem:[%s206 + $0x40] sm:$0xf]
        %v232 = vld [vmem:[%s206 + $0x44] sm:$0x1]
        %v233 = vld [vmem:[%s206 + $0x48] sm:$0xf]
        %v234 = vld [vmem:[%s206 + $0x4c] sm:$0xf]
        %v235 = vld [vmem:[%s206 + $0x50] sm:$0x1]
        %v236 = vld [vmem:[%s206 + $0x54] sm:$0xf]
        %v237 = vld [vmem:[%s206 + $0x58] sm:$0xf]
        %v238 = vld [vmem:[%s206 + $0x5c] sm:$0x1]
        %v239 = vld [vmem:[%s206 + $0x60] sm:$0xf]
        %v240 = vld [vmem:[%s206 + $0x64] sm:$0xf]
        %v241 = vld [vmem:[%s206 + $0x68] sm:$0x1]
        %v242 = vld [vmem:[%s206 + $0x6c] sm:$0xf]
        %v243 = vld [vmem:[%s206 + $0x70] sm:$0xf]
        %v244 = vld [vmem:[%s206 + $0x74] sm:$0x1]
        %v245 = vld [vmem:[%s206 + $0x78] sm:$0xf]
        %v246 = vld [vmem:[%s206 + $0x7c] sm:$0xf]
        %v247 = vld [vmem:[%s206 + $0x80] sm:$0x1]
        %v248 = vld [vmem:[%s206 + $0x84] sm:$0xf]
        %v249 = vld [vmem:[%s206 + $0x88] sm:$0xf]
        %v250 = vld [vmem:[%s206 + $0x8c] sm:$0x1]
        %v251 = vld [vmem:[%s206 + $0x90] sm:$0xf]
        %v252 = vld [vmem:[%s206 + $0x94] sm:$0xf]
        %v253 = vld [vmem:[%s206 + $0x98] sm:$0x1]
        %v254 = vld [vmem:[%s206 + $0x9c] sm:$0xf]
        %v255 = vld [vmem:[%s206 + $0xa0] sm:$0xf]
        %v256 = vld [vmem:[%s206 + $0xa4] sm:$0x1]
        %v257 = vld [vmem:[%s206 + $0xa8] sm:$0xf]
        %v258 = vld [vmem:[%s206 + $0xac] sm:$0xf]
        %v259 = vld [vmem:[%s206 + $0xb0] sm:$0x1]
        %v260 = vld [vmem:[%s206 + $0xb4] sm:$0xf]
        %v261 = vld [vmem:[%s206 + $0xb8] sm:$0xf]
        %v262 = vld [vmem:[%s206 + $0xbc] sm:$0x1]
        %v263 = vld [vmem:[%s206 + $0xc0] sm:$0xf]
        %v264 = vld [vmem:[%s206 + $0xc4] sm:$0xf]
        %v265 = vld [vmem:[%s206 + $0xc8] sm:$0x1]
        %v266 = vld [vmem:[%s206 + $0xcc] sm:$0xf]
        %v267 = vld [vmem:[%s206 + $0xd0] sm:$0xf]
        %v268 = vld [vmem:[%s206 + $0xd4] sm:$0x1]
        %v269 = vunpack.c.l.bf16 %v215
        %v270 = vunpack.c.l.bf16 %v216
        %v271 = vunpack.c.l.bf16 %v217
        %v272 = vunpack.c.l.bf16 %v218
        %v273 = vunpack.c.l.bf16 %v219
        %v274 = vunpack.c.l.bf16 %v220
        %v275 = vunpack.c.l.bf16 %v221
        %v276 = vunpack.c.l.bf16 %v222
        %v277 = vunpack.c.l.bf16 %v223
        %v278 = vunpack.c.l.bf16 %v224
        %v279 = vunpack.c.l.bf16 %v225
        %v280 = vunpack.c.l.bf16 %v226
        %v281 = vunpack.c.l.bf16 %v227
        %v282 = vunpack.c.l.bf16 %v228
        %v283 = vunpack.c.l.bf16 %v229
        %v284 = vunpack.c.l.bf16 %v230
        %v285 = vunpack.c.l.bf16 %v231
        %v286 = vunpack.c.l.bf16 %v232
        %v287 = vunpack.c.l.bf16 %v233
        %v288 = vunpack.c.l.bf16 %v234
        %v289 = vunpack.c.l.bf16 %v235
        %v290 = vunpack.c.l.bf16 %v236
        %v291 = vunpack.c.l.bf16 %v237
        %v292 = vunpack.c.l.bf16 %v238
        %v293 = vunpack.c.l.bf16 %v239
        %v294 = vunpack.c.l.bf16 %v240
        %v295 = vunpack.c.l.bf16 %v241
        %v296 = vunpack.c.l.bf16 %v242
        %v297 = vunpack.c.l.bf16 %v243
        %v298 = vunpack.c.l.bf16 %v244
        %v299 = vunpack.c.l.bf16 %v245
        %v300 = vunpack.c.l.bf16 %v246
        %v301 = vunpack.c.l.bf16 %v247
        %v302 = vunpack.c.l.bf16 %v248
        %v303 = vunpack.c.l.bf16 %v249
        %v304 = vunpack.c.l.bf16 %v250
        %v305 = vunpack.c.l.bf16 %v251
        %v306 = vunpack.c.l.bf16 %v252
        %v307 = vunpack.c.l.bf16 %v253
        %v308 = vunpack.c.l.bf16 %v254
        %v309 = vunpack.c.l.bf16 %v255
        %v310 = vunpack.c.l.bf16 %v256
        %v311 = vunpack.c.l.bf16 %v257
        %v312 = vunpack.c.l.bf16 %v258
        %v313 = vunpack.c.l.bf16 %v259
        %v314 = vunpack.c.l.bf16 %v260
        %v315 = vunpack.c.l.bf16 %v261
        %v316 = vunpack.c.l.bf16 %v262
        %v317 = vunpack.c.l.bf16 %v263
        %v318 = vunpack.c.l.bf16 %v264
        %v319 = vunpack.c.l.bf16 %v265
        %v320 = vunpack.c.l.bf16 %v266
        %v321 = vunpack.c.l.bf16 %v267
        %v322 = vunpack.c.l.bf16 %v268
        %v323 = vpack.c.bf16 %v270, %v269
        %v324 = vpack.c.bf16 %v273, %v272
        %v325 = vpack.c.bf16 %v276, %v275
        %v326 = vpack.c.bf16 %v279, %v278
        %v327 = vpack.c.bf16 %v282, %v281
        %v328 = vpack.c.bf16 %v285, %v284
        %v329 = vpack.c.bf16 %v288, %v287
        %v330 = vpack.c.bf16 %v291, %v290
        %v331 = vpack.c.bf16 %v294, %v293
        %v332 = vpack.c.bf16 %v297, %v296
        %v333 = vpack.c.bf16 %v300, %v299
        %v334 = vpack.c.bf16 %v303, %v302
        %v335 = vpack.c.bf16 %v306, %v305
        %v336 = vpack.c.bf16 %v309, %v308
        %v337 = vpack.c.bf16 %v312, %v311
        %v338 = vpack.c.bf16 %v315, %v314
        %v339 = vld [vmem:[%s210] sm:$0x3]
        %vm388 = vcmask 1046528
        %v389 = vrot.slane %v269, 1
        %v390 = vrot.slane %v270, 1
        %v391 = vsel %vm388, %v389, %v390
        %v392 = vrot.slane %v271, 1
        %v393 = vsel %vm388, %v390, %v392
        %v394 = vrot.slane %v272, 1
        %v395 = vrot.slane %v273, 1
        %v396 = vsel %vm388, %v394, %v395
        %v397 = vrot.slane %v274, 1
        %v398 = vsel %vm388, %v395, %v397
        %v399 = vrot.slane %v275, 1
        %v400 = vrot.slane %v276, 1
        %v401 = vsel %vm388, %v399, %v400
        %v402 = vrot.slane %v277, 1
        %v403 = vsel %vm388, %v400, %v402
        %v404 = vrot.slane %v278, 1
        %v405 = vrot.slane %v279, 1
        %v406 = vsel %vm388, %v404, %v405
        %v407 = vrot.slane %v280, 1
        %v408 = vsel %vm388, %v405, %v407
        %v409 = vrot.slane %v281, 1
        %v410 = vrot.slane %v282, 1
        %v411 = vsel %vm388, %v409, %v410
        %v412 = vrot.slane %v283, 1
        %v413 = vsel %vm388, %v410, %v412
        %v414 = vrot.slane %v284, 1
        %v415 = vrot.slane %v285, 1
        %v416 = vsel %vm388, %v414, %v415
        %v417 = vrot.slane %v286, 1
        %v418 = vsel %vm388, %v415, %v417
        %v419 = vrot.slane %v287, 1
        %v420 = vrot.slane %v288, 1
        %v421 = vsel %vm388, %v419, %v420
        %v422 = vrot.slane %v289, 1
        %v423 = vsel %vm388, %v420, %v422
        %v424 = vrot.slane %v290, 1
        %v425 = vrot.slane %v291, 1
        %v426 = vsel %vm388, %v424, %v425
        %v427 = vrot.slane %v292, 1
        %v428 = vsel %vm388, %v425, %v427
        %v429 = vrot.slane %v293, 1
        %v430 = vrot.slane %v294, 1
        %v431 = vsel %vm388, %v429, %v430
        %v432 = vrot.slane %v295, 1
        %v433 = vsel %vm388, %v430, %v432
        %v434 = vrot.slane %v296, 1
        %v435 = vrot.slane %v297, 1
        %v436 = vsel %vm388, %v434, %v435
        %v437 = vrot.slane %v298, 1
        %v438 = vsel %vm388, %v435, %v437
        %v439 = vrot.slane %v299, 1
        %v440 = vrot.slane %v300, 1
        %v441 = vsel %vm388, %v439, %v440
        %v442 = vrot.slane %v301, 1
        %v443 = vsel %vm388, %v440, %v442
        %v444 = vrot.slane %v302, 1
        %v445 = vrot.slane %v303, 1
        %v446 = vsel %vm388, %v444, %v445
        %v447 = vrot.slane %v304, 1
        %v448 = vsel %vm388, %v445, %v447
        %v449 = vrot.slane %v305, 1
        %v450 = vrot.slane %v306, 1
        %v451 = vsel %vm388, %v449, %v450
        %v452 = vrot.slane %v307, 1
        %v453 = vsel %vm388, %v450, %v452
        %v454 = vrot.slane %v308, 1
        %v455 = vrot.slane %v309, 1
        %v456 = vsel %vm388, %v454, %v455
        %v457 = vrot.slane %v310, 1
        %v458 = vsel %vm388, %v455, %v457
        %v459 = vrot.slane %v311, 1
        %v460 = vrot.slane %v312, 1
        %v461 = vsel %vm388, %v459, %v460
        %v462 = vrot.slane %v313, 1
        %v463 = vsel %vm388, %v460, %v462
        %v464 = vrot.slane %v314, 1
        %v465 = vrot.slane %v315, 1
        %v466 = vsel %vm388, %v464, %v465
        %v467 = vrot.slane %v316, 1
        %v468 = vsel %vm388, %v465, %v467
        %v501 = vpack.c.bf16 %v393, %v391
        %v502 = vpack.c.bf16 %v398, %v396
        %v503 = vpack.c.bf16 %v403, %v401
        %v504 = vpack.c.bf16 %v408, %v406
        %v505 = vpack.c.bf16 %v413, %v411
        %v506 = vpack.c.bf16 %v418, %v416
        %v507 = vpack.c.bf16 %v423, %v421
        %v508 = vpack.c.bf16 %v428, %v426
        %v509 = vpack.c.bf16 %v433, %v431
        %v510 = vpack.c.bf16 %v438, %v436
        %v511 = vpack.c.bf16 %v443, %v441
        %v512 = vpack.c.bf16 %v448, %v446
        %v513 = vpack.c.bf16 %v453, %v451
        %v514 = vpack.c.bf16 %v458, %v456
        %v515 = vpack.c.bf16 %v463, %v461
        %v516 = vpack.c.bf16 %v468, %v466
        %s517 = scalar_lea.vmem %s210, 2
        %v518 = vld [vmem:[%s517] sm:$0x3]
        %vm519 = vcmask 31744
        %v521 = vsel %vm519, %v501, 0
        %v524 = vsel %vm519, %v502, 0
        %v527 = vsel %vm519, %v503, 0
        %v530 = vsel %vm519, %v504, 0
        %v533 = vsel %vm519, %v505, 0
        %v536 = vsel %vm519, %v506, 0
        %v539 = vsel %vm519, %v507, 0
        %v542 = vsel %vm519, %v508, 0
        %v545 = vsel %vm519, %v509, 0
        %v548 = vsel %vm519, %v510, 0
        %v551 = vsel %vm519, %v511, 0
        %v554 = vsel %vm519, %v512, 0
        %v557 = vsel %vm519, %v513, 0
        %v560 = vsel %vm519, %v514, 0
        %v563 = vsel %vm519, %v515, 0
        %v566 = vsel %vm519, %v516, 0
        %vm568 = vcmask 1041408
        %v570 = vsel %vm568, %v518, 0
        %572 = vmatpush.bf16.msra.mxu0 0
        %573 = vmatpush.bf16.msra.mxu0 0
        %574 = vmatpush.bf16.msra.mxu0 0
        %575 = vmatpush.bf16.msra.mxu0 0
        %576 = vmatpush.bf16.msra.mxu0 0
        %577 = vmatpush.bf16.msra.mxu0 0
        %578 = vmatpush.bf16.msra.mxu0 0
        %579 = vmatpush.bf16.msra.mxu0 %v570
        %580 = vmatmul.bf16.gmra.mxu0 %v521
        %v581 = vpop.f32.mrf.mxu0
        %v582 = vadd.f32 0.0, %v581
        %v583 = vpop.f32.mrf.mxu0
        %v584 = vadd.f32 0.0, %v583
        %585 = vmatmul.bf16.gmra.mxu0 %v524
        %v586 = vpop.f32.mrf.mxu0
        %v587 = vadd.f32 0.0, %v586
        %v588 = vpop.f32.mrf.mxu0
        %v589 = vadd.f32 0.0, %v588
        %590 = vmatmul.bf16.gmra.mxu0 %v527
        %v591 = vpop.f32.mrf.mxu0
        %v592 = vadd.f32 0.0, %v591
        %v593 = vpop.f32.mrf.mxu0
        %v594 = vadd.f32 0.0, %v593
        %595 = vmatmul.bf16.gmra.mxu0 %v530
        %v596 = vpop.f32.mrf.mxu0
        %v597 = vadd.f32 0.0, %v596
        %v598 = vpop.f32.mrf.mxu0
        %v599 = vadd.f32 0.0, %v598
        %600 = vmatmul.bf16.gmra.mxu0 %v533
        %v601 = vpop.f32.mrf.mxu0
        %v602 = vadd.f32 0.0, %v601
        %v603 = vpop.f32.mrf.mxu0
        %v604 = vadd.f32 0.0, %v603
        %605 = vmatmul.bf16.gmra.mxu0 %v536
        %v606 = vpop.f32.mrf.mxu0
        %v607 = vadd.f32 0.0, %v606
        %v608 = vpop.f32.mrf.mxu0
        %v609 = vadd.f32 0.0, %v608
        %610 = vmatmul.bf16.gmra.mxu0 %v539
        %v611 = vpop.f32.mrf.mxu0
        %v612 = vadd.f32 0.0, %v611
        %v613 = vpop.f32.mrf.mxu0
        %v614 = vadd.f32 0.0, %v613
        %615 = vmatmul.bf16.gmra.mxu0 %v542
        %v616 = vpop.f32.mrf.mxu0
        %v617 = vadd.f32 0.0, %v616
        %v618 = vpop.f32.mrf.mxu0
        %v619 = vadd.f32 0.0, %v618
        %620 = vmatmul.bf16.gmra.mxu0 %v545
        %v621 = vpop.f32.mrf.mxu0
        %v622 = vadd.f32 0.0, %v621
        %v623 = vpop.f32.mrf.mxu0
        %v624 = vadd.f32 0.0, %v623
        %625 = vmatmul.bf16.gmra.mxu0 %v548
        %v626 = vpop.f32.mrf.mxu0
        %v627 = vadd.f32 0.0, %v626
        %v628 = vpop.f32.mrf.mxu0
        %v629 = vadd.f32 0.0, %v628
        %630 = vmatmul.bf16.gmra.mxu0 %v551
        %v631 = vpop.f32.mrf.mxu0
        %v632 = vadd.f32 0.0, %v631
        %v633 = vpop.f32.mrf.mxu0
        %v634 = vadd.f32 0.0, %v633
        %635 = vmatmul.bf16.gmra.mxu0 %v554
        %v636 = vpop.f32.mrf.mxu0
        %v637 = vadd.f32 0.0, %v636
        %v638 = vpop.f32.mrf.mxu0
        %v639 = vadd.f32 0.0, %v638
        %640 = vmatmul.bf16.gmra.mxu0 %v557
        %v641 = vpop.f32.mrf.mxu0
        %v642 = vadd.f32 0.0, %v641
        %v643 = vpop.f32.mrf.mxu0
        %v644 = vadd.f32 0.0, %v643
        %645 = vmatmul.bf16.gmra.mxu0 %v560
        %v646 = vpop.f32.mrf.mxu0
        %v647 = vadd.f32 0.0, %v646
        %v648 = vpop.f32.mrf.mxu0
        %v649 = vadd.f32 0.0, %v648
        %650 = vmatmul.bf16.gmra.mxu0 %v563
        %v651 = vpop.f32.mrf.mxu0
        %v652 = vadd.f32 0.0, %v651
        %v653 = vpop.f32.mrf.mxu0
        %v654 = vadd.f32 0.0, %v653
        %655 = vmatmul.bf16.gmra.mxu0 %v566
        %v656 = vpop.f32.mrf.mxu0
        %v657 = vadd.f32 0.0, %v656
        %v658 = vpop.f32.mrf.mxu0
        %v659 = vadd.f32 0.0, %v658
        %660 = vdwg.mxu0
        %v662 = vsel %vm519, %v323, 0
        %v665 = vsel %vm519, %v324, 0
        %v668 = vsel %vm519, %v325, 0
        %v671 = vsel %vm519, %v326, 0
        %v674 = vsel %vm519, %v327, 0
        %v677 = vsel %vm519, %v328, 0
        %v680 = vsel %vm519, %v329, 0
        %v683 = vsel %vm519, %v330, 0
        %v686 = vsel %vm519, %v331, 0
        %v689 = vsel %vm519, %v332, 0
        %v692 = vsel %vm519, %v333, 0
        %v695 = vsel %vm519, %v334, 0
        %v698 = vsel %vm519, %v335, 0
        %v701 = vsel %vm519, %v336, 0
        %v704 = vsel %vm519, %v337, 0
        %v707 = vsel %vm519, %v338, 0
        %v710 = vsel %vm568, %v339, 0
        %712 = vmatpush.bf16.msra.mxu0 0
        %713 = vmatpush.bf16.msra.mxu0 0
        %714 = vmatpush.bf16.msra.mxu0 0
        %715 = vmatpush.bf16.msra.mxu0 0
        %716 = vmatpush.bf16.msra.mxu0 0
        %717 = vmatpush.bf16.msra.mxu0 0
        %718 = vmatpush.bf16.msra.mxu0 0
        %719 = vmatpush.bf16.msra.mxu0 %v710
        %720 = vmatmul.bf16.gmra.mxu0 %v662
        %v721 = vpop.f32.mrf.mxu0
        %v722 = vadd.f32 %v582, %v721
        %v723 = vpop.f32.mrf.mxu0
        %v724 = vadd.f32 %v584, %v723
        %725 = vmatmul.bf16.gmra.mxu0 %v665
        %v726 = vpop.f32.mrf.mxu0
        %v727 = vadd.f32 %v587, %v726
        %v728 = vpop.f32.mrf.mxu0
        %v729 = vadd.f32 %v589, %v728
        %730 = vmatmul.bf16.gmra.mxu0 %v668
        %v731 = vpop.f32.mrf.mxu0
        %v732 = vadd.f32 %v592, %v731
        %v733 = vpop.f32.mrf.mxu0
        %v734 = vadd.f32 %v594, %v733
        %735 = vmatmul.bf16.gmra.mxu0 %v671
        %v736 = vpop.f32.mrf.mxu0
        %v737 = vadd.f32 %v597, %v736
        %v738 = vpop.f32.mrf.mxu0
        %v739 = vadd.f32 %v599, %v738
        %740 = vmatmul.bf16.gmra.mxu0 %v674
        %v741 = vpop.f32.mrf.mxu0
        %v742 = vadd.f32 %v602, %v741
        %v743 = vpop.f32.mrf.mxu0
        %v744 = vadd.f32 %v604, %v743
        %745 = vmatmul.bf16.gmra.mxu0 %v677
        %v746 = vpop.f32.mrf.mxu0
        %v747 = vadd.f32 %v607, %v746
        %v748 = vpop.f32.mrf.mxu0
        %v749 = vadd.f32 %v609, %v748
        %750 = vmatmul.bf16.gmra.mxu0 %v680
        %v751 = vpop.f32.mrf.mxu0
        %v752 = vadd.f32 %v612, %v751
        %v753 = vpop.f32.mrf.mxu0
        %v754 = vadd.f32 %v614, %v753
        %755 = vmatmul.bf16.gmra.mxu0 %v683
        %v756 = vpop.f32.mrf.mxu0
        %v757 = vadd.f32 %v617, %v756
        %v758 = vpop.f32.mrf.mxu0
        %v759 = vadd.f32 %v619, %v758
        %760 = vmatmul.bf16.gmra.mxu0 %v686
        %v761 = vpop.f32.mrf.mxu0
        %v762 = vadd.f32 %v622, %v761
        %v763 = vpop.f32.mrf.mxu0
        %v764 = vadd.f32 %v624, %v763
        %765 = vmatmul.bf16.gmra.mxu0 %v689
        %v766 = vpop.f32.mrf.mxu0
        %v767 = vadd.f32 %v627, %v766
        %v768 = vpop.f32.mrf.mxu0
        %v769 = vadd.f32 %v629, %v768
        %770 = vmatmul.bf16.gmra.mxu0 %v692
        %v771 = vpop.f32.mrf.mxu0
        %v772 = vadd.f32 %v632, %v771
        %v773 = vpop.f32.mrf.mxu0
        %v774 = vadd.f32 %v634, %v773
        %775 = vmatmul.bf16.gmra.mxu0 %v695
        %v776 = vpop.f32.mrf.mxu0
        %v777 = vadd.f32 %v637, %v776
        %v778 = vpop.f32.mrf.mxu0
        %v779 = vadd.f32 %v639, %v778
        %780 = vmatmul.bf16.gmra.mxu0 %v698
        %v781 = vpop.f32.mrf.mxu0
        %v782 = vadd.f32 %v642, %v781
        %v783 = vpop.f32.mrf.mxu0
        %v784 = vadd.f32 %v644, %v783
        %785 = vmatmul.bf16.gmra.mxu0 %v701
        %v786 = vpop.f32.mrf.mxu0
        %v787 = vadd.f32 %v647, %v786
        %v788 = vpop.f32.mrf.mxu0
        %v789 = vadd.f32 %v649, %v788
        %790 = vmatmul.bf16.gmra.mxu0 %v704
        %v791 = vpop.f32.mrf.mxu0
        %v792 = vadd.f32 %v652, %v791
        %v793 = vpop.f32.mrf.mxu0
        %v794 = vadd.f32 %v654, %v793
        %795 = vmatmul.bf16.gmra.mxu0 %v707
        %v796 = vpop.f32.mrf.mxu0
        %v797 = vadd.f32 %v657, %v796
        %v798 = vpop.f32.mrf.mxu0
        %v799 = vadd.f32 %v659, %v798
        %800 = vdwg.mxu0
        %vm801 = vcmask 1045504
        %v802 = vrot.slane %v269, 2
        %v803 = vrot.slane %v270, 2
        %v804 = vsel %vm801, %v802, %v803
        %v805 = vrot.slane %v271, 2
        %v806 = vsel %vm801, %v803, %v805
        %v807 = vrot.slane %v272, 2
        %v808 = vrot.slane %v273, 2
        %v809 = vsel %vm801, %v807, %v808
        %v810 = vrot.slane %v274, 2
        %v811 = vsel %vm801, %v808, %v810
        %v812 = vrot.slane %v275, 2
        %v813 = vrot.slane %v276, 2
        %v814 = vsel %vm801, %v812, %v813
        %v815 = vrot.slane %v277, 2
        %v816 = vsel %vm801, %v813, %v815
        %v817 = vrot.slane %v278, 2
        %v818 = vrot.slane %v279, 2
        %v819 = vsel %vm801, %v817, %v818
        %v820 = vrot.slane %v280, 2
        %v821 = vsel %vm801, %v818, %v820
        %v822 = vrot.slane %v281, 2
        %v823 = vrot.slane %v282, 2
        %v824 = vsel %vm801, %v822, %v823
        %v825 = vrot.slane %v283, 2
        %v826 = vsel %vm801, %v823, %v825
        %v827 = vrot.slane %v284, 2
        %v828 = vrot.slane %v285, 2
        %v829 = vsel %vm801, %v827, %v828
        %v830 = vrot.slane %v286, 2
        %v831 = vsel %vm801, %v828, %v830
        %v832 = vrot.slane %v287, 2
        %v833 = vrot.slane %v288, 2
        %v834 = vsel %vm801, %v832, %v833
        %v835 = vrot.slane %v289, 2
        %v836 = vsel %vm801, %v833, %v835
        %v837 = vrot.slane %v290, 2
        %v838 = vrot.slane %v291, 2
        %v839 = vsel %vm801, %v837, %v838
        %v840 = vrot.slane %v292, 2
        %v841 = vsel %vm801, %v838, %v840
        %v842 = vrot.slane %v293, 2
        %v843 = vrot.slane %v294, 2
        %v844 = vsel %vm801, %v842, %v843
        %v845 = vrot.slane %v295, 2
        %v846 = vsel %vm801, %v843, %v845
        %v847 = vrot.slane %v296, 2
        %v848 = vrot.slane %v297, 2
        %v849 = vsel %vm801, %v847, %v848
        %v850 = vrot.slane %v298, 2
        %v851 = vsel %vm801, %v848, %v850
        %v852 = vrot.slane %v299, 2
        %v853 = vrot.slane %v300, 2
        %v854 = vsel %vm801, %v852, %v853
        %v855 = vrot.slane %v301, 2
        %v856 = vsel %vm801, %v853, %v855
        %v857 = vrot.slane %v302, 2
        %v858 = vrot.slane %v303, 2
        %v859 = vsel %vm801, %v857, %v858
        %v860 = vrot.slane %v304, 2
        %v861 = vsel %vm801, %v858, %v860
        %v862 = vrot.slane %v305, 2
        %v863 = vrot.slane %v306, 2
        %v864 = vsel %vm801, %v862, %v863
        %v865 = vrot.slane %v307, 2
        %v866 = vsel %vm801, %v863, %v865
        %v867 = vrot.slane %v308, 2
        %v868 = vrot.slane %v309, 2
        %v869 = vsel %vm801, %v867, %v868
        %v870 = vrot.slane %v310, 2
        %v871 = vsel %vm801, %v868, %v870
        %v872 = vrot.slane %v311, 2
        %v873 = vrot.slane %v312, 2
        %v874 = vsel %vm801, %v872, %v873
        %v875 = vrot.slane %v313, 2
        %v876 = vsel %vm801, %v873, %v875
        %v877 = vrot.slane %v314, 2
        %v878 = vrot.slane %v315, 2
        %v879 = vsel %vm801, %v877, %v878
        %v880 = vrot.slane %v316, 2
        %v881 = vsel %vm801, %v878, %v880
        %v914 = vpack.c.bf16 %v806, %v804
        %v915 = vpack.c.bf16 %v811, %v809
        %v916 = vpack.c.bf16 %v816, %v814
        %v917 = vpack.c.bf16 %v821, %v819
        %v918 = vpack.c.bf16 %v826, %v824
        %v919 = vpack.c.bf16 %v831, %v829
        %v920 = vpack.c.bf16 %v836, %v834
        %v921 = vpack.c.bf16 %v841, %v839
        %v922 = vpack.c.bf16 %v846, %v844
        %v923 = vpack.c.bf16 %v851, %v849
        %v924 = vpack.c.bf16 %v856, %v854
        %v925 = vpack.c.bf16 %v861, %v859
        %v926 = vpack.c.bf16 %v866, %v864
        %v927 = vpack.c.bf16 %v871, %v869
        %v928 = vpack.c.bf16 %v876, %v874
        %v929 = vpack.c.bf16 %v881, %v879
        %s930 = scalar_lea.vmem %s210, 4
        %v931 = vld [vmem:[%s930] sm:$0x3]
        %v933 = vsel %vm519, %v914, 0
        %v936 = vsel %vm519, %v915, 0
        %v939 = vsel %vm519, %v916, 0
        %v942 = vsel %vm519, %v917, 0
        %v945 = vsel %vm519, %v918, 0
        %v948 = vsel %vm519, %v919, 0
        %v951 = vsel %vm519, %v920, 0
        %v954 = vsel %vm519, %v921, 0
        %v957 = vsel %vm519, %v922, 0
        %v960 = vsel %vm519, %v923, 0
        %v963 = vsel %vm519, %v924, 0
        %v966 = vsel %vm519, %v925, 0
        %v969 = vsel %vm519, %v926, 0
        %v972 = vsel %vm519, %v927, 0
        %v975 = vsel %vm519, %v928, 0
        %v978 = vsel %vm519, %v929, 0
        %v981 = vsel %vm568, %v931, 0
        %983 = vmatpush.bf16.msra.mxu0 0
        %984 = vmatpush.bf16.msra.mxu0 0
        %985 = vmatpush.bf16.msra.mxu0 0
        %986 = vmatpush.bf16.msra.mxu0 0
        %987 = vmatpush.bf16.msra.mxu0 0
        %988 = vmatpush.bf16.msra.mxu0 0
        %989 = vmatpush.bf16.msra.mxu0 0
        %990 = vmatpush.bf16.msra.mxu0 %v981
        %991 = vmatmul.bf16.gmra.mxu0 %v933
        %v992 = vpop.f32.mrf.mxu0
        %v993 = vadd.f32 0.0, %v992
        %v994 = vpop.f32.mrf.mxu0
        %v995 = vadd.f32 0.0, %v994
        %996 = vmatmul.bf16.gmra.mxu0 %v936
        %v997 = vpop.f32.mrf.mxu0
        %v998 = vadd.f32 0.0, %v997
        %v999 = vpop.f32.mrf.mxu0
        %v1000 = vadd.f32 0.0, %v999
        %1001 = vmatmul.bf16.gmra.mxu0 %v939
        %v1002 = vpop.f32.mrf.mxu0
        %v1003 = vadd.f32 0.0, %v1002
        %v1004 = vpop.f32.mrf.mxu0
        %v1005 = vadd.f32 0.0, %v1004
        %1006 = vmatmul.bf16.gmra.mxu0 %v942
        %v1007 = vpop.f32.mrf.mxu0
        %v1008 = vadd.f32 0.0, %v1007
        %v1009 = vpop.f32.mrf.mxu0
        %v1010 = vadd.f32 0.0, %v1009
        %1011 = vmatmul.bf16.gmra.mxu0 %v945
        %v1012 = vpop.f32.mrf.mxu0
        %v1013 = vadd.f32 0.0, %v1012
        %v1014 = vpop.f32.mrf.mxu0
        %v1015 = vadd.f32 0.0, %v1014
        %1016 = vmatmul.bf16.gmra.mxu0 %v948
        %v1017 = vpop.f32.mrf.mxu0
        %v1018 = vadd.f32 0.0, %v1017
        %v1019 = vpop.f32.mrf.mxu0
        %v1020 = vadd.f32 0.0, %v1019
        %1021 = vmatmul.bf16.gmra.mxu0 %v951
        %v1022 = vpop.f32.mrf.mxu0
        %v1023 = vadd.f32 0.0, %v1022
        %v1024 = vpop.f32.mrf.mxu0
        %v1025 = vadd.f32 0.0, %v1024
        %1026 = vmatmul.bf16.gmra.mxu0 %v954
        %v1027 = vpop.f32.mrf.mxu0
        %v1028 = vadd.f32 0.0, %v1027
        %v1029 = vpop.f32.mrf.mxu0
        %v1030 = vadd.f32 0.0, %v1029
        %1031 = vmatmul.bf16.gmra.mxu0 %v957
        %v1032 = vpop.f32.mrf.mxu0
        %v1033 = vadd.f32 0.0, %v1032
        %v1034 = vpop.f32.mrf.mxu0
        %v1035 = vadd.f32 0.0, %v1034
        %1036 = vmatmul.bf16.gmra.mxu0 %v960
        %v1037 = vpop.f32.mrf.mxu0
        %v1038 = vadd.f32 0.0, %v1037
        %v1039 = vpop.f32.mrf.mxu0
        %v1040 = vadd.f32 0.0, %v1039
        %1041 = vmatmul.bf16.gmra.mxu0 %v963
        %v1042 = vpop.f32.mrf.mxu0
        %v1043 = vadd.f32 0.0, %v1042
        %v1044 = vpop.f32.mrf.mxu0
        %v1045 = vadd.f32 0.0, %v1044
        %1046 = vmatmul.bf16.gmra.mxu0 %v966
        %v1047 = vpop.f32.mrf.mxu0
        %v1048 = vadd.f32 0.0, %v1047
        %v1049 = vpop.f32.mrf.mxu0
        %v1050 = vadd.f32 0.0, %v1049
        %1051 = vmatmul.bf16.gmra.mxu0 %v969
        %v1052 = vpop.f32.mrf.mxu0
        %v1053 = vadd.f32 0.0, %v1052
        %v1054 = vpop.f32.mrf.mxu0
        %v1055 = vadd.f32 0.0, %v1054
        %1056 = vmatmul.bf16.gmra.mxu0 %v972
        %v1057 = vpop.f32.mrf.mxu0
        %v1058 = vadd.f32 0.0, %v1057
        %v1059 = vpop.f32.mrf.mxu0
        %v1060 = vadd.f32 0.0, %v1059
        %1061 = vmatmul.bf16.gmra.mxu0 %v975
        %v1062 = vpop.f32.mrf.mxu0
        %v1063 = vadd.f32 0.0, %v1062
        %v1064 = vpop.f32.mrf.mxu0
        %v1065 = vadd.f32 0.0, %v1064
        %1066 = vmatmul.bf16.gmra.mxu0 %v978
        %v1067 = vpop.f32.mrf.mxu0
        %v1068 = vadd.f32 0.0, %v1067
        %v1069 = vpop.f32.mrf.mxu0
        %v1070 = vadd.f32 0.0, %v1069
        %1071 = vdwg.mxu0
        %v1072 = vadd.f32 %v722, %v993
        %v1073 = vadd.f32 %v724, %v995
        %v1074 = vadd.f32 %v727, %v998
        %v1075 = vadd.f32 %v729, %v1000
        %v1076 = vadd.f32 %v732, %v1003
        %v1077 = vadd.f32 %v734, %v1005
        %v1078 = vadd.f32 %v737, %v1008
        %v1079 = vadd.f32 %v739, %v1010
        %v1080 = vadd.f32 %v742, %v1013
        %v1081 = vadd.f32 %v744, %v1015
        %v1082 = vadd.f32 %v747, %v1018
        %v1083 = vadd.f32 %v749, %v1020
        %v1084 = vadd.f32 %v752, %v1023
        %v1085 = vadd.f32 %v754, %v1025
        %v1086 = vadd.f32 %v757, %v1028
        %v1087 = vadd.f32 %v759, %v1030
        %v1088 = vadd.f32 %v762, %v1033
        %v1089 = vadd.f32 %v764, %v1035
        %v1090 = vadd.f32 %v767, %v1038
        %v1091 = vadd.f32 %v769, %v1040
        %v1092 = vadd.f32 %v772, %v1043
        %v1093 = vadd.f32 %v774, %v1045
        %v1094 = vadd.f32 %v777, %v1048
        %v1095 = vadd.f32 %v779, %v1050
        %v1096 = vadd.f32 %v782, %v1053
        %v1097 = vadd.f32 %v784, %v1055
        %v1098 = vadd.f32 %v787, %v1058
        %v1099 = vadd.f32 %v789, %v1060
        %v1100 = vadd.f32 %v792, %v1063
        %v1101 = vadd.f32 %v794, %v1065
        %v1102 = vadd.f32 %v797, %v1068
        %v1103 = vadd.f32 %v799, %v1070
        %v1104 = vpack.c.bf16 %v318, %v317
        %s1105 = scalar_lea.vmem %s210, 6
        %v1106 = vld [vmem:[%s1105] sm:$0x3]
        %v1108 = vsel %vm519, %v1104, 0
        %v1111 = vsel %vm568, %v1106, 0
        %1113 = vmatpush.bf16.msra.mxu0 0
        %1114 = vmatpush.bf16.msra.mxu0 0
        %1115 = vmatpush.bf16.msra.mxu0 0
        %1116 = vmatpush.bf16.msra.mxu0 0
        %1117 = vmatpush.bf16.msra.mxu0 0
        %1118 = vmatpush.bf16.msra.mxu0 0
        %1119 = vmatpush.bf16.msra.mxu0 0
        %1120 = vmatpush.bf16.msra.mxu0 %v1111
        %1121 = vmatmul.bf16.gmra.mxu0 %v665
        %v1122 = vpop.f32.mrf.mxu0
        %v1123 = vadd.f32 0.0, %v1122
        %v1124 = vpop.f32.mrf.mxu0
        %v1125 = vadd.f32 0.0, %v1124
        %1126 = vmatmul.bf16.gmra.mxu0 %v668
        %v1127 = vpop.f32.mrf.mxu0
        %v1128 = vadd.f32 0.0, %v1127
        %v1129 = vpop.f32.mrf.mxu0
        %v1130 = vadd.f32 0.0, %v1129
        %1131 = vmatmul.bf16.gmra.mxu0 %v671
        %v1132 = vpop.f32.mrf.mxu0
        %v1133 = vadd.f32 0.0, %v1132
        %v1134 = vpop.f32.mrf.mxu0
        %v1135 = vadd.f32 0.0, %v1134
        %1136 = vmatmul.bf16.gmra.mxu0 %v674
        %v1137 = vpop.f32.mrf.mxu0
        %v1138 = vadd.f32 0.0, %v1137
        %v1139 = vpop.f32.mrf.mxu0
        %v1140 = vadd.f32 0.0, %v1139
        %1141 = vmatmul.bf16.gmra.mxu0 %v677
        %v1142 = vpop.f32.mrf.mxu0
        %v1143 = vadd.f32 0.0, %v1142
        %v1144 = vpop.f32.mrf.mxu0
        %v1145 = vadd.f32 0.0, %v1144
        %1146 = vmatmul.bf16.gmra.mxu0 %v680
        %v1147 = vpop.f32.mrf.mxu0
        %v1148 = vadd.f32 0.0, %v1147
        %v1149 = vpop.f32.mrf.mxu0
        %v1150 = vadd.f32 0.0, %v1149
        %1151 = vmatmul.bf16.gmra.mxu0 %v683
        %v1152 = vpop.f32.mrf.mxu0
        %v1153 = vadd.f32 0.0, %v1152
        %v1154 = vpop.f32.mrf.mxu0
        %v1155 = vadd.f32 0.0, %v1154
        %1156 = vmatmul.bf16.gmra.mxu0 %v686
        %v1157 = vpop.f32.mrf.mxu0
        %v1158 = vadd.f32 0.0, %v1157
        %v1159 = vpop.f32.mrf.mxu0
        %v1160 = vadd.f32 0.0, %v1159
        %1161 = vmatmul.bf16.gmra.mxu0 %v689
        %v1162 = vpop.f32.mrf.mxu0
        %v1163 = vadd.f32 0.0, %v1162
        %v1164 = vpop.f32.mrf.mxu0
        %v1165 = vadd.f32 0.0, %v1164
        %1166 = vmatmul.bf16.gmra.mxu0 %v692
        %v1167 = vpop.f32.mrf.mxu0
        %v1168 = vadd.f32 0.0, %v1167
        %v1169 = vpop.f32.mrf.mxu0
        %v1170 = vadd.f32 0.0, %v1169
        %1171 = vmatmul.bf16.gmra.mxu0 %v695
        %v1172 = vpop.f32.mrf.mxu0
        %v1173 = vadd.f32 0.0, %v1172
        %v1174 = vpop.f32.mrf.mxu0
        %v1175 = vadd.f32 0.0, %v1174
        %1176 = vmatmul.bf16.gmra.mxu0 %v698
        %v1177 = vpop.f32.mrf.mxu0
        %v1178 = vadd.f32 0.0, %v1177
        %v1179 = vpop.f32.mrf.mxu0
        %v1180 = vadd.f32 0.0, %v1179
        %1181 = vmatmul.bf16.gmra.mxu0 %v701
        %v1182 = vpop.f32.mrf.mxu0
        %v1183 = vadd.f32 0.0, %v1182
        %v1184 = vpop.f32.mrf.mxu0
        %v1185 = vadd.f32 0.0, %v1184
        %1186 = vmatmul.bf16.gmra.mxu0 %v704
        %v1187 = vpop.f32.mrf.mxu0
        %v1188 = vadd.f32 0.0, %v1187
        %v1189 = vpop.f32.mrf.mxu0
        %v1190 = vadd.f32 0.0, %v1189
        %1191 = vmatmul.bf16.gmra.mxu0 %v707
        %v1192 = vpop.f32.mrf.mxu0
        %v1193 = vadd.f32 0.0, %v1192
        %v1194 = vpop.f32.mrf.mxu0
        %v1195 = vadd.f32 0.0, %v1194
        %1196 = vmatmul.bf16.gmra.mxu0 %v1108
        %v1197 = vpop.f32.mrf.mxu0
        %v1198 = vadd.f32 0.0, %v1197
        %v1199 = vpop.f32.mrf.mxu0
        %v1200 = vadd.f32 0.0, %v1199
        %1201 = vdwg.mxu0
        %v1202 = vadd.f32 %v1072, %v1123
        %v1203 = vadd.f32 %v1073, %v1125
        %v1204 = vadd.f32 %v1074, %v1128
        %v1205 = vadd.f32 %v1075, %v1130
        %v1206 = vadd.f32 %v1076, %v1133
        %v1207 = vadd.f32 %v1077, %v1135
        %v1208 = vadd.f32 %v1078, %v1138
        %v1209 = vadd.f32 %v1079, %v1140
        %v1210 = vadd.f32 %v1080, %v1143
        %v1211 = vadd.f32 %v1081, %v1145
        %v1212 = vadd.f32 %v1082, %v1148
        %v1213 = vadd.f32 %v1083, %v1150
        %v1214 = vadd.f32 %v1084, %v1153
        %v1215 = vadd.f32 %v1085, %v1155
        %v1216 = vadd.f32 %v1086, %v1158
        %v1217 = vadd.f32 %v1087, %v1160
        %v1218 = vadd.f32 %v1088, %v1163
        %v1219 = vadd.f32 %v1089, %v1165
        %v1220 = vadd.f32 %v1090, %v1168
        %v1221 = vadd.f32 %v1091, %v1170
        %v1222 = vadd.f32 %v1092, %v1173
        %v1223 = vadd.f32 %v1093, %v1175
        %v1224 = vadd.f32 %v1094, %v1178
        %v1225 = vadd.f32 %v1095, %v1180
        %v1226 = vadd.f32 %v1096, %v1183
        %v1227 = vadd.f32 %v1097, %v1185
        %v1228 = vadd.f32 %v1098, %v1188
        %v1229 = vadd.f32 %v1099, %v1190
        %v1230 = vadd.f32 %v1100, %v1193
        %v1231 = vadd.f32 %v1101, %v1195
        %v1232 = vadd.f32 %v1102, %v1198
        %v1233 = vadd.f32 %v1103, %v1200
        %v1237 = vrot.slane %v317, 1
        %v1238 = vrot.slane %v318, 1
        %v1239 = vsel %vm388, %v1237, %v1238
        %v1240 = vrot.slane %v319, 1
        %v1241 = vsel %vm388, %v1238, %v1240
        %v1244 = vpack.c.bf16 %v1241, %v1239
        %s1245 = scalar_lea.vmem %s210, 8
        %v1246 = vld [vmem:[%s1245] sm:$0x3]
        %v1248 = vsel %vm519, %v1244, 0
        %v1251 = vsel %vm568, %v1246, 0
        %1253 = vmatpush.bf16.msra.mxu0 0
        %1254 = vmatpush.bf16.msra.mxu0 0
        %1255 = vmatpush.bf16.msra.mxu0 0
        %1256 = vmatpush.bf16.msra.mxu0 0
        %1257 = vmatpush.bf16.msra.mxu0 0
        %1258 = vmatpush.bf16.msra.mxu0 0
        %1259 = vmatpush.bf16.msra.mxu0 0
        %1260 = vmatpush.bf16.msra.mxu0 %v1251
        %1261 = vmatmul.bf16.gmra.mxu0 %v524
        %v1262 = vpop.f32.mrf.mxu0
        %v1263 = vadd.f32 0.0, %v1262
        %v1264 = vpop.f32.mrf.mxu0
        %v1265 = vadd.f32 0.0, %v1264
        %1266 = vmatmul.bf16.gmra.mxu0 %v527
        %v1267 = vpop.f32.mrf.mxu0
        %v1268 = vadd.f32 0.0, %v1267
        %v1269 = vpop.f32.mrf.mxu0
        %v1270 = vadd.f32 0.0, %v1269
        %1271 = vmatmul.bf16.gmra.mxu0 %v530
        %v1272 = vpop.f32.mrf.mxu0
        %v1273 = vadd.f32 0.0, %v1272
        %v1274 = vpop.f32.mrf.mxu0
        %v1275 = vadd.f32 0.0, %v1274
        %1276 = vmatmul.bf16.gmra.mxu0 %v533
        %v1277 = vpop.f32.mrf.mxu0
        %v1278 = vadd.f32 0.0, %v1277
        %v1279 = vpop.f32.mrf.mxu0
        %v1280 = vadd.f32 0.0, %v1279
        %1281 = vmatmul.bf16.gmra.mxu0 %v536
        %v1282 = vpop.f32.mrf.mxu0
        %v1283 = vadd.f32 0.0, %v1282
        %v1284 = vpop.f32.mrf.mxu0
        %v1285 = vadd.f32 0.0, %v1284
        %1286 = vmatmul.bf16.gmra.mxu0 %v539
        %v1287 = vpop.f32.mrf.mxu0
        %v1288 = vadd.f32 0.0, %v1287
        %v1289 = vpop.f32.mrf.mxu0
        %v1290 = vadd.f32 0.0, %v1289
        %1291 = vmatmul.bf16.gmra.mxu0 %v542
        %v1292 = vpop.f32.mrf.mxu0
        %v1293 = vadd.f32 0.0, %v1292
        %v1294 = vpop.f32.mrf.mxu0
        %v1295 = vadd.f32 0.0, %v1294
        %1296 = vmatmul.bf16.gmra.mxu0 %v545
        %v1297 = vpop.f32.mrf.mxu0
        %v1298 = vadd.f32 0.0, %v1297
        %v1299 = vpop.f32.mrf.mxu0
        %v1300 = vadd.f32 0.0, %v1299
        %1301 = vmatmul.bf16.gmra.mxu0 %v548
        %v1302 = vpop.f32.mrf.mxu0
        %v1303 = vadd.f32 0.0, %v1302
        %v1304 = vpop.f32.mrf.mxu0
        %v1305 = vadd.f32 0.0, %v1304
        %1306 = vmatmul.bf16.gmra.mxu0 %v551
        %v1307 = vpop.f32.mrf.mxu0
        %v1308 = vadd.f32 0.0, %v1307
        %v1309 = vpop.f32.mrf.mxu0
        %v1310 = vadd.f32 0.0, %v1309
        %1311 = vmatmul.bf16.gmra.mxu0 %v554
        %v1312 = vpop.f32.mrf.mxu0
        %v1313 = vadd.f32 0.0, %v1312
        %v1314 = vpop.f32.mrf.mxu0
        %v1315 = vadd.f32 0.0, %v1314
        %1316 = vmatmul.bf16.gmra.mxu0 %v557
        %v1317 = vpop.f32.mrf.mxu0
        %v1318 = vadd.f32 0.0, %v1317
        %v1319 = vpop.f32.mrf.mxu0
        %v1320 = vadd.f32 0.0, %v1319
        %1321 = vmatmul.bf16.gmra.mxu0 %v560
        %v1322 = vpop.f32.mrf.mxu0
        %v1323 = vadd.f32 0.0, %v1322
        %v1324 = vpop.f32.mrf.mxu0
        %v1325 = vadd.f32 0.0, %v1324
        %1326 = vmatmul.bf16.gmra.mxu0 %v563
        %v1327 = vpop.f32.mrf.mxu0
        %v1328 = vadd.f32 0.0, %v1327
        %v1329 = vpop.f32.mrf.mxu0
        %v1330 = vadd.f32 0.0, %v1329
        %1331 = vmatmul.bf16.gmra.mxu0 %v566
        %v1332 = vpop.f32.mrf.mxu0
        %v1333 = vadd.f32 0.0, %v1332
        %v1334 = vpop.f32.mrf.mxu0
        %v1335 = vadd.f32 0.0, %v1334
        %1336 = vmatmul.bf16.gmra.mxu0 %v1248
        %v1337 = vpop.f32.mrf.mxu0
        %v1338 = vadd.f32 0.0, %v1337
        %v1339 = vpop.f32.mrf.mxu0
        %v1340 = vadd.f32 0.0, %v1339
        %1341 = vdwg.mxu0
        %v1342 = vadd.f32 %v1202, %v1263
        %v1343 = vadd.f32 %v1203, %v1265
        %v1344 = vadd.f32 %v1204, %v1268
        %v1345 = vadd.f32 %v1205, %v1270
        %v1346 = vadd.f32 %v1206, %v1273
        %v1347 = vadd.f32 %v1207, %v1275
        %v1348 = vadd.f32 %v1208, %v1278
        %v1349 = vadd.f32 %v1209, %v1280
        %v1350 = vadd.f32 %v1210, %v1283
        %v1351 = vadd.f32 %v1211, %v1285
        %v1352 = vadd.f32 %v1212, %v1288
        %v1353 = vadd.f32 %v1213, %v1290
        %v1354 = vadd.f32 %v1214, %v1293
        %v1355 = vadd.f32 %v1215, %v1295
        %v1356 = vadd.f32 %v1216, %v1298
        %v1357 = vadd.f32 %v1217, %v1300
        %v1358 = vadd.f32 %v1218, %v1303
        %v1359 = vadd.f32 %v1219, %v1305
        %v1360 = vadd.f32 %v1220, %v1308
        %v1361 = vadd.f32 %v1221, %v1310
        %v1362 = vadd.f32 %v1222, %v1313
        %v1363 = vadd.f32 %v1223, %v1315
        %v1364 = vadd.f32 %v1224, %v1318
        %v1365 = vadd.f32 %v1225, %v1320
        %v1366 = vadd.f32 %v1226, %v1323
        %v1367 = vadd.f32 %v1227, %v1325
        %v1368 = vadd.f32 %v1228, %v1328
        %v1369 = vadd.f32 %v1229, %v1330
        %v1370 = vadd.f32 %v1230, %v1333
        %v1371 = vadd.f32 %v1231, %v1335
        %v1372 = vadd.f32 %v1232, %v1338
        %v1373 = vadd.f32 %v1233, %v1340
        %v1374 = vrot.slane %v317, 2
        %v1375 = vrot.slane %v318, 2
        %v1376 = vsel %vm801, %v1374, %v1375
        %v1377 = vrot.slane %v319, 2
        %v1378 = vsel %vm801, %v1375, %v1377
        %v1381 = vpack.c.bf16 %v1378, %v1376
        %s1382 = scalar_lea.vmem %s210, 10
        %v1383 = vld [vmem:[%s1382] sm:$0x3]
        %v1385 = vsel %vm519, %v1381, 0
        %v1388 = vsel %vm568, %v1383, 0
        %1390 = vmatpush.bf16.msra.mxu0 0
        %1391 = vmatpush.bf16.msra.mxu0 0
        %1392 = vmatpush.bf16.msra.mxu0 0
        %1393 = vmatpush.bf16.msra.mxu0 0
        %1394 = vmatpush.bf16.msra.mxu0 0
        %1395 = vmatpush.bf16.msra.mxu0 0
        %1396 = vmatpush.bf16.msra.mxu0 0
        %1397 = vmatpush.bf16.msra.mxu0 %v1388
        %1398 = vmatmul.bf16.gmra.mxu0 %v936
        %v1399 = vpop.f32.mrf.mxu0
        %v1400 = vadd.f32 0.0, %v1399
        %v1401 = vpop.f32.mrf.mxu0
        %v1402 = vadd.f32 0.0, %v1401
        %1403 = vmatmul.bf16.gmra.mxu0 %v939
        %v1404 = vpop.f32.mrf.mxu0
        %v1405 = vadd.f32 0.0, %v1404
        %v1406 = vpop.f32.mrf.mxu0
        %v1407 = vadd.f32 0.0, %v1406
        %1408 = vmatmul.bf16.gmra.mxu0 %v942
        %v1409 = vpop.f32.mrf.mxu0
        %v1410 = vadd.f32 0.0, %v1409
        %v1411 = vpop.f32.mrf.mxu0
        %v1412 = vadd.f32 0.0, %v1411
        %1413 = vmatmul.bf16.gmra.mxu0 %v945
        %v1414 = vpop.f32.mrf.mxu0
        %v1415 = vadd.f32 0.0, %v1414
        %v1416 = vpop.f32.mrf.mxu0
        %v1417 = vadd.f32 0.0, %v1416
        %1418 = vmatmul.bf16.gmra.mxu0 %v948
        %v1419 = vpop.f32.mrf.mxu0
        %v1420 = vadd.f32 0.0, %v1419
        %v1421 = vpop.f32.mrf.mxu0
        %v1422 = vadd.f32 0.0, %v1421
        %1423 = vmatmul.bf16.gmra.mxu0 %v951
        %v1424 = vpop.f32.mrf.mxu0
        %v1425 = vadd.f32 0.0, %v1424
        %v1426 = vpop.f32.mrf.mxu0
        %v1427 = vadd.f32 0.0, %v1426
        %1428 = vmatmul.bf16.gmra.mxu0 %v954
        %v1429 = vpop.f32.mrf.mxu0
        %v1430 = vadd.f32 0.0, %v1429
        %v1431 = vpop.f32.mrf.mxu0
        %v1432 = vadd.f32 0.0, %v1431
        %1433 = vmatmul.bf16.gmra.mxu0 %v957
        %v1434 = vpop.f32.mrf.mxu0
        %v1435 = vadd.f32 0.0, %v1434
        %v1436 = vpop.f32.mrf.mxu0
        %v1437 = vadd.f32 0.0, %v1436
        %1438 = vmatmul.bf16.gmra.mxu0 %v960
        %v1439 = vpop.f32.mrf.mxu0
        %v1440 = vadd.f32 0.0, %v1439
        %v1441 = vpop.f32.mrf.mxu0
        %v1442 = vadd.f32 0.0, %v1441
        %1443 = vmatmul.bf16.gmra.mxu0 %v963
        %v1444 = vpop.f32.mrf.mxu0
        %v1445 = vadd.f32 0.0, %v1444
        %v1446 = vpop.f32.mrf.mxu0
        %v1447 = vadd.f32 0.0, %v1446
        %1448 = vmatmul.bf16.gmra.mxu0 %v966
        %v1449 = vpop.f32.mrf.mxu0
        %v1450 = vadd.f32 0.0, %v1449
        %v1451 = vpop.f32.mrf.mxu0
        %v1452 = vadd.f32 0.0, %v1451
        %1453 = vmatmul.bf16.gmra.mxu0 %v969
        %v1454 = vpop.f32.mrf.mxu0
        %v1455 = vadd.f32 0.0, %v1454
        %v1456 = vpop.f32.mrf.mxu0
        %v1457 = vadd.f32 0.0, %v1456
        %1458 = vmatmul.bf16.gmra.mxu0 %v972
        %v1459 = vpop.f32.mrf.mxu0
        %v1460 = vadd.f32 0.0, %v1459
        %v1461 = vpop.f32.mrf.mxu0
        %v1462 = vadd.f32 0.0, %v1461
        %1463 = vmatmul.bf16.gmra.mxu0 %v975
        %v1464 = vpop.f32.mrf.mxu0
        %v1465 = vadd.f32 0.0, %v1464
        %v1466 = vpop.f32.mrf.mxu0
        %v1467 = vadd.f32 0.0, %v1466
        %1468 = vmatmul.bf16.gmra.mxu0 %v978
        %v1469 = vpop.f32.mrf.mxu0
        %v1470 = vadd.f32 0.0, %v1469
        %v1471 = vpop.f32.mrf.mxu0
        %v1472 = vadd.f32 0.0, %v1471
        %1473 = vmatmul.bf16.gmra.mxu0 %v1385
        %v1474 = vpop.f32.mrf.mxu0
        %v1475 = vadd.f32 0.0, %v1474
        %v1476 = vpop.f32.mrf.mxu0
        %v1477 = vadd.f32 0.0, %v1476
        %1478 = vdwg.mxu0
        %v1479 = vadd.f32 %v1342, %v1400
        %v1480 = vadd.f32 %v1343, %v1402
        %v1481 = vadd.f32 %v1344, %v1405
        %v1482 = vadd.f32 %v1345, %v1407
        %v1483 = vadd.f32 %v1346, %v1410
        %v1484 = vadd.f32 %v1347, %v1412
        %v1485 = vadd.f32 %v1348, %v1415
        %v1486 = vadd.f32 %v1349, %v1417
        %v1487 = vadd.f32 %v1350, %v1420
        %v1488 = vadd.f32 %v1351, %v1422
        %v1489 = vadd.f32 %v1352, %v1425
        %v1490 = vadd.f32 %v1353, %v1427
        %v1491 = vadd.f32 %v1354, %v1430
        %v1492 = vadd.f32 %v1355, %v1432
        %v1493 = vadd.f32 %v1356, %v1435
        %v1494 = vadd.f32 %v1357, %v1437
        %v1495 = vadd.f32 %v1358, %v1440
        %v1496 = vadd.f32 %v1359, %v1442
        %v1497 = vadd.f32 %v1360, %v1445
        %v1498 = vadd.f32 %v1361, %v1447
        %v1499 = vadd.f32 %v1362, %v1450
        %v1500 = vadd.f32 %v1363, %v1452
        %v1501 = vadd.f32 %v1364, %v1455
        %v1502 = vadd.f32 %v1365, %v1457
        %v1503 = vadd.f32 %v1366, %v1460
        %v1504 = vadd.f32 %v1367, %v1462
        %v1505 = vadd.f32 %v1368, %v1465
        %v1506 = vadd.f32 %v1369, %v1467
        %v1507 = vadd.f32 %v1370, %v1470
        %v1508 = vadd.f32 %v1371, %v1472
        %v1509 = vadd.f32 %v1372, %v1475
        %v1510 = vadd.f32 %v1373, %v1477
        %v1511 = vpack.c.bf16 %v321, %v320
        %s1512 = scalar_lea.vmem %s210, 12
        %v1513 = vld [vmem:[%s1512] sm:$0x3]
        %v1515 = vsel %vm519, %v1511, 0
        %v1518 = vsel %vm568, %v1513, 0
        %1520 = vmatpush.bf16.msra.mxu0 0
        %1521 = vmatpush.bf16.msra.mxu0 0
        %1522 = vmatpush.bf16.msra.mxu0 0
        %1523 = vmatpush.bf16.msra.mxu0 0
        %1524 = vmatpush.bf16.msra.mxu0 0
        %1525 = vmatpush.bf16.msra.mxu0 0
        %1526 = vmatpush.bf16.msra.mxu0 0
        %1527 = vmatpush.bf16.msra.mxu0 %v1518
        %1528 = vmatmul.bf16.gmra.mxu0 %v668
        %v1529 = vpop.f32.mrf.mxu0
        %v1530 = vadd.f32 0.0, %v1529
        %v1531 = vpop.f32.mrf.mxu0
        %v1532 = vadd.f32 0.0, %v1531
        %1533 = vmatmul.bf16.gmra.mxu0 %v671
        %v1534 = vpop.f32.mrf.mxu0
        %v1535 = vadd.f32 0.0, %v1534
        %v1536 = vpop.f32.mrf.mxu0
        %v1537 = vadd.f32 0.0, %v1536
        %1538 = vmatmul.bf16.gmra.mxu0 %v674
        %v1539 = vpop.f32.mrf.mxu0
        %v1540 = vadd.f32 0.0, %v1539
        %v1541 = vpop.f32.mrf.mxu0
        %v1542 = vadd.f32 0.0, %v1541
        %1543 = vmatmul.bf16.gmra.mxu0 %v677
        %v1544 = vpop.f32.mrf.mxu0
        %v1545 = vadd.f32 0.0, %v1544
        %v1546 = vpop.f32.mrf.mxu0
        %v1547 = vadd.f32 0.0, %v1546
        %1548 = vmatmul.bf16.gmra.mxu0 %v680
        %v1549 = vpop.f32.mrf.mxu0
        %v1550 = vadd.f32 0.0, %v1549
        %v1551 = vpop.f32.mrf.mxu0
        %v1552 = vadd.f32 0.0, %v1551
        %1553 = vmatmul.bf16.gmra.mxu0 %v683
        %v1554 = vpop.f32.mrf.mxu0
        %v1555 = vadd.f32 0.0, %v1554
        %v1556 = vpop.f32.mrf.mxu0
        %v1557 = vadd.f32 0.0, %v1556
        %1558 = vmatmul.bf16.gmra.mxu0 %v686
        %v1559 = vpop.f32.mrf.mxu0
        %v1560 = vadd.f32 0.0, %v1559
        %v1561 = vpop.f32.mrf.mxu0
        %v1562 = vadd.f32 0.0, %v1561
        %1563 = vmatmul.bf16.gmra.mxu0 %v689
        %v1564 = vpop.f32.mrf.mxu0
        %v1565 = vadd.f32 0.0, %v1564
        %v1566 = vpop.f32.mrf.mxu0
        %v1567 = vadd.f32 0.0, %v1566
        %1568 = vmatmul.bf16.gmra.mxu0 %v692
        %v1569 = vpop.f32.mrf.mxu0
        %v1570 = vadd.f32 0.0, %v1569
        %v1571 = vpop.f32.mrf.mxu0
        %v1572 = vadd.f32 0.0, %v1571
        %1573 = vmatmul.bf16.gmra.mxu0 %v695
        %v1574 = vpop.f32.mrf.mxu0
        %v1575 = vadd.f32 0.0, %v1574
        %v1576 = vpop.f32.mrf.mxu0
        %v1577 = vadd.f32 0.0, %v1576
        %1578 = vmatmul.bf16.gmra.mxu0 %v698
        %v1579 = vpop.f32.mrf.mxu0
        %v1580 = vadd.f32 0.0, %v1579
        %v1581 = vpop.f32.mrf.mxu0
        %v1582 = vadd.f32 0.0, %v1581
        %1583 = vmatmul.bf16.gmra.mxu0 %v701
        %v1584 = vpop.f32.mrf.mxu0
        %v1585 = vadd.f32 0.0, %v1584
        %v1586 = vpop.f32.mrf.mxu0
        %v1587 = vadd.f32 0.0, %v1586
        %1588 = vmatmul.bf16.gmra.mxu0 %v704
        %v1589 = vpop.f32.mrf.mxu0
        %v1590 = vadd.f32 0.0, %v1589
        %v1591 = vpop.f32.mrf.mxu0
        %v1592 = vadd.f32 0.0, %v1591
        %1593 = vmatmul.bf16.gmra.mxu0 %v707
        %v1594 = vpop.f32.mrf.mxu0
        %v1595 = vadd.f32 0.0, %v1594
        %v1596 = vpop.f32.mrf.mxu0
        %v1597 = vadd.f32 0.0, %v1596
        %1598 = vmatmul.bf16.gmra.mxu0 %v1108
        %v1599 = vpop.f32.mrf.mxu0
        %v1600 = vadd.f32 0.0, %v1599
        %v1601 = vpop.f32.mrf.mxu0
        %v1602 = vadd.f32 0.0, %v1601
        %1603 = vmatmul.bf16.gmra.mxu0 %v1515
        %v1604 = vpop.f32.mrf.mxu0
        %v1605 = vadd.f32 0.0, %v1604
        %v1606 = vpop.f32.mrf.mxu0
        %v1607 = vadd.f32 0.0, %v1606
        %1608 = vdwg.mxu0
        %v1609 = vadd.f32 %v1479, %v1530
        %v1610 = vadd.f32 %v1480, %v1532
        %v1611 = vadd.f32 %v1481, %v1535
        %v1612 = vadd.f32 %v1482, %v1537
        %v1613 = vadd.f32 %v1483, %v1540
        %v1614 = vadd.f32 %v1484, %v1542
        %v1615 = vadd.f32 %v1485, %v1545
        %v1616 = vadd.f32 %v1486, %v1547
        %v1617 = vadd.f32 %v1487, %v1550
        %v1618 = vadd.f32 %v1488, %v1552
        %v1619 = vadd.f32 %v1489, %v1555
        %v1620 = vadd.f32 %v1490, %v1557
        %v1621 = vadd.f32 %v1491, %v1560
        %v1622 = vadd.f32 %v1492, %v1562
        %v1623 = vadd.f32 %v1493, %v1565
        %v1624 = vadd.f32 %v1494, %v1567
        %v1625 = vadd.f32 %v1495, %v1570
        %v1626 = vadd.f32 %v1496, %v1572
        %v1627 = vadd.f32 %v1497, %v1575
        %v1628 = vadd.f32 %v1498, %v1577
        %v1629 = vadd.f32 %v1499, %v1580
        %v1630 = vadd.f32 %v1500, %v1582
        %v1631 = vadd.f32 %v1501, %v1585
        %v1632 = vadd.f32 %v1502, %v1587
        %v1633 = vadd.f32 %v1503, %v1590
        %v1634 = vadd.f32 %v1504, %v1592
        %v1635 = vadd.f32 %v1505, %v1595
        %v1636 = vadd.f32 %v1506, %v1597
        %v1637 = vadd.f32 %v1507, %v1600
        %v1638 = vadd.f32 %v1508, %v1602
        %v1639 = vadd.f32 %v1509, %v1605
        %v1640 = vadd.f32 %v1510, %v1607
        %v1644 = vrot.slane %v320, 1
        %v1645 = vrot.slane %v321, 1
        %v1646 = vsel %vm388, %v1644, %v1645
        %v1647 = vrot.slane %v322, 1
        %v1648 = vsel %vm388, %v1645, %v1647
        %v1651 = vpack.c.bf16 %v1648, %v1646
        %s1652 = scalar_lea.vmem %s210, 14
        %v1653 = vld [vmem:[%s1652] sm:$0x3]
        %v1655 = vsel %vm519, %v1651, 0
        %v1658 = vsel %vm568, %v1653, 0
        %1660 = vmatpush.bf16.msra.mxu0 0
        %1661 = vmatpush.bf16.msra.mxu0 0
        %1662 = vmatpush.bf16.msra.mxu0 0
        %1663 = vmatpush.bf16.msra.mxu0 0
        %1664 = vmatpush.bf16.msra.mxu0 0
        %1665 = vmatpush.bf16.msra.mxu0 0
        %1666 = vmatpush.bf16.msra.mxu0 0
        %1667 = vmatpush.bf16.msra.mxu0 %v1658
        %1668 = vmatmul.bf16.gmra.mxu0 %v527
        %v1669 = vpop.f32.mrf.mxu0
        %v1670 = vadd.f32 0.0, %v1669
        %v1671 = vpop.f32.mrf.mxu0
        %v1672 = vadd.f32 0.0, %v1671
        %1673 = vmatmul.bf16.gmra.mxu0 %v530
        %v1674 = vpop.f32.mrf.mxu0
        %v1675 = vadd.f32 0.0, %v1674
        %v1676 = vpop.f32.mrf.mxu0
        %v1677 = vadd.f32 0.0, %v1676
        %1678 = vmatmul.bf16.gmra.mxu0 %v533
        %v1679 = vpop.f32.mrf.mxu0
        %v1680 = vadd.f32 0.0, %v1679
        %v1681 = vpop.f32.mrf.mxu0
        %v1682 = vadd.f32 0.0, %v1681
        %1683 = vmatmul.bf16.gmra.mxu0 %v536
        %v1684 = vpop.f32.mrf.mxu0
        %v1685 = vadd.f32 0.0, %v1684
        %v1686 = vpop.f32.mrf.mxu0
        %v1687 = vadd.f32 0.0, %v1686
        %1688 = vmatmul.bf16.gmra.mxu0 %v539
        %v1689 = vpop.f32.mrf.mxu0
        %v1690 = vadd.f32 0.0, %v1689
        %v1691 = vpop.f32.mrf.mxu0
        %v1692 = vadd.f32 0.0, %v1691
        %1693 = vmatmul.bf16.gmra.mxu0 %v542
        %v1694 = vpop.f32.mrf.mxu0
        %v1695 = vadd.f32 0.0, %v1694
        %v1696 = vpop.f32.mrf.mxu0
        %v1697 = vadd.f32 0.0, %v1696
        %1698 = vmatmul.bf16.gmra.mxu0 %v545
        %v1699 = vpop.f32.mrf.mxu0
        %v1700 = vadd.f32 0.0, %v1699
        %v1701 = vpop.f32.mrf.mxu0
        %v1702 = vadd.f32 0.0, %v1701
        %1703 = vmatmul.bf16.gmra.mxu0 %v548
        %v1704 = vpop.f32.mrf.mxu0
        %v1705 = vadd.f32 0.0, %v1704
        %v1706 = vpop.f32.mrf.mxu0
        %v1707 = vadd.f32 0.0, %v1706
        %1708 = vmatmul.bf16.gmra.mxu0 %v551
        %v1709 = vpop.f32.mrf.mxu0
        %v1710 = vadd.f32 0.0, %v1709
        %v1711 = vpop.f32.mrf.mxu0
        %v1712 = vadd.f32 0.0, %v1711
        %1713 = vmatmul.bf16.gmra.mxu0 %v554
        %v1714 = vpop.f32.mrf.mxu0
        %v1715 = vadd.f32 0.0, %v1714
        %v1716 = vpop.f32.mrf.mxu0
        %v1717 = vadd.f32 0.0, %v1716
        %1718 = vmatmul.bf16.gmra.mxu0 %v557
        %v1719 = vpop.f32.mrf.mxu0
        %v1720 = vadd.f32 0.0, %v1719
        %v1721 = vpop.f32.mrf.mxu0
        %v1722 = vadd.f32 0.0, %v1721
        %1723 = vmatmul.bf16.gmra.mxu0 %v560
        %v1724 = vpop.f32.mrf.mxu0
        %v1725 = vadd.f32 0.0, %v1724
        %v1726 = vpop.f32.mrf.mxu0
        %v1727 = vadd.f32 0.0, %v1726
        %1728 = vmatmul.bf16.gmra.mxu0 %v563
        %v1729 = vpop.f32.mrf.mxu0
        %v1730 = vadd.f32 0.0, %v1729
        %v1731 = vpop.f32.mrf.mxu0
        %v1732 = vadd.f32 0.0, %v1731
        %1733 = vmatmul.bf16.gmra.mxu0 %v566
        %v1734 = vpop.f32.mrf.mxu0
        %v1735 = vadd.f32 0.0, %v1734
        %v1736 = vpop.f32.mrf.mxu0
        %v1737 = vadd.f32 0.0, %v1736
        %1738 = vmatmul.bf16.gmra.mxu0 %v1248
        %v1739 = vpop.f32.mrf.mxu0
        %v1740 = vadd.f32 0.0, %v1739
        %v1741 = vpop.f32.mrf.mxu0
        %v1742 = vadd.f32 0.0, %v1741
        %1743 = vmatmul.bf16.gmra.mxu0 %v1655
        %v1744 = vpop.f32.mrf.mxu0
        %v1745 = vadd.f32 0.0, %v1744
        %v1746 = vpop.f32.mrf.mxu0
        %v1747 = vadd.f32 0.0, %v1746
        %1748 = vdwg.mxu0
        %v1749 = vadd.f32 %v1609, %v1670
        %v1750 = vadd.f32 %v1610, %v1672
        %v1751 = vadd.f32 %v1611, %v1675
        %v1752 = vadd.f32 %v1612, %v1677
        %v1753 = vadd.f32 %v1613, %v1680
        %v1754 = vadd.f32 %v1614, %v1682
        %v1755 = vadd.f32 %v1615, %v1685
        %v1756 = vadd.f32 %v1616, %v1687
        %v1757 = vadd.f32 %v1617, %v1690
        %v1758 = vadd.f32 %v1618, %v1692
        %v1759 = vadd.f32 %v1619, %v1695
        %v1760 = vadd.f32 %v1620, %v1697
        %v1761 = vadd.f32 %v1621, %v1700
        %v1762 = vadd.f32 %v1622, %v1702
        %v1763 = vadd.f32 %v1623, %v1705
        %v1764 = vadd.f32 %v1624, %v1707
        %v1765 = vadd.f32 %v1625, %v1710
        %v1766 = vadd.f32 %v1626, %v1712
        %v1767 = vadd.f32 %v1627, %v1715
        %v1768 = vadd.f32 %v1628, %v1717
        %v1769 = vadd.f32 %v1629, %v1720
        %v1770 = vadd.f32 %v1630, %v1722
        %v1771 = vadd.f32 %v1631, %v1725
        %v1772 = vadd.f32 %v1632, %v1727
        %v1773 = vadd.f32 %v1633, %v1730
        %v1774 = vadd.f32 %v1634, %v1732
        %v1775 = vadd.f32 %v1635, %v1735
        %v1776 = vadd.f32 %v1636, %v1737
        %v1777 = vadd.f32 %v1637, %v1740
        %v1778 = vadd.f32 %v1638, %v1742
        %v1779 = vadd.f32 %v1639, %v1745
        %v1780 = vadd.f32 %v1640, %v1747
        %v1781 = vrot.slane %v320, 2
        %v1782 = vrot.slane %v321, 2
        %v1783 = vsel %vm801, %v1781, %v1782
        %v1784 = vrot.slane %v322, 2
        %v1785 = vsel %vm801, %v1782, %v1784
        %v1788 = vpack.c.bf16 %v1785, %v1783
        %s1789 = scalar_lea.vmem %s210, 16
        %v1790 = vld [vmem:[%s1789] sm:$0x3]
        %v1792 = vsel %vm519, %v1788, 0
        %v1795 = vsel %vm568, %v1790, 0
        %1797 = vmatpush.bf16.msra.mxu0 0
        %1798 = vmatpush.bf16.msra.mxu0 0
        %1799 = vmatpush.bf16.msra.mxu0 0
        %1800 = vmatpush.bf16.msra.mxu0 0
        %1801 = vmatpush.bf16.msra.mxu0 0
        %1802 = vmatpush.bf16.msra.mxu0 0
        %1803 = vmatpush.bf16.msra.mxu0 0
        %1804 = vmatpush.bf16.msra.mxu0 %v1795
        %1805 = vmatmul.bf16.gmra.mxu0 %v939
        %v1806 = vpop.f32.mrf.mxu0
        %v1807 = vadd.f32 0.0, %v1806
        %v1808 = vpop.f32.mrf.mxu0
        %v1809 = vadd.f32 0.0, %v1808
        %1810 = vmatmul.bf16.gmra.mxu0 %v942
        %v1811 = vpop.f32.mrf.mxu0
        %v1812 = vadd.f32 0.0, %v1811
        %v1813 = vpop.f32.mrf.mxu0
        %v1814 = vadd.f32 0.0, %v1813
        %1815 = vmatmul.bf16.gmra.mxu0 %v945
        %v1816 = vpop.f32.mrf.mxu0
        %v1817 = vadd.f32 0.0, %v1816
        %v1818 = vpop.f32.mrf.mxu0
        %v1819 = vadd.f32 0.0, %v1818
        %1820 = vmatmul.bf16.gmra.mxu0 %v948
        %v1821 = vpop.f32.mrf.mxu0
        %v1822 = vadd.f32 0.0, %v1821
        %v1823 = vpop.f32.mrf.mxu0
        %v1824 = vadd.f32 0.0, %v1823
        %1825 = vmatmul.bf16.gmra.mxu0 %v951
        %v1826 = vpop.f32.mrf.mxu0
        %v1827 = vadd.f32 0.0, %v1826
        %v1828 = vpop.f32.mrf.mxu0
        %v1829 = vadd.f32 0.0, %v1828
        %1830 = vmatmul.bf16.gmra.mxu0 %v954
        %v1831 = vpop.f32.mrf.mxu0
        %v1832 = vadd.f32 0.0, %v1831
        %v1833 = vpop.f32.mrf.mxu0
        %v1834 = vadd.f32 0.0, %v1833
        %1835 = vmatmul.bf16.gmra.mxu0 %v957
        %v1836 = vpop.f32.mrf.mxu0
        %v1837 = vadd.f32 0.0, %v1836
        %v1838 = vpop.f32.mrf.mxu0
        %v1839 = vadd.f32 0.0, %v1838
        %1840 = vmatmul.bf16.gmra.mxu0 %v960
        %v1841 = vpop.f32.mrf.mxu0
        %v1842 = vadd.f32 0.0, %v1841
        %v1843 = vpop.f32.mrf.mxu0
        %v1844 = vadd.f32 0.0, %v1843
        %1845 = vmatmul.bf16.gmra.mxu0 %v963
        %v1846 = vpop.f32.mrf.mxu0
        %v1847 = vadd.f32 0.0, %v1846
        %v1848 = vpop.f32.mrf.mxu0
        %v1849 = vadd.f32 0.0, %v1848
        %1850 = vmatmul.bf16.gmra.mxu0 %v966
        %v1851 = vpop.f32.mrf.mxu0
        %v1852 = vadd.f32 0.0, %v1851
        %v1853 = vpop.f32.mrf.mxu0
        %v1854 = vadd.f32 0.0, %v1853
        %1855 = vmatmul.bf16.gmra.mxu0 %v969
        %v1856 = vpop.f32.mrf.mxu0
        %v1857 = vadd.f32 0.0, %v1856
        %v1858 = vpop.f32.mrf.mxu0
        %v1859 = vadd.f32 0.0, %v1858
        %1860 = vmatmul.bf16.gmra.mxu0 %v972
        %v1861 = vpop.f32.mrf.mxu0
        %v1862 = vadd.f32 0.0, %v1861
        %v1863 = vpop.f32.mrf.mxu0
        %v1864 = vadd.f32 0.0, %v1863
        %1865 = vmatmul.bf16.gmra.mxu0 %v975
        %v1866 = vpop.f32.mrf.mxu0
        %v1867 = vadd.f32 0.0, %v1866
        %v1868 = vpop.f32.mrf.mxu0
        %v1869 = vadd.f32 0.0, %v1868
        %1870 = vmatmul.bf16.gmra.mxu0 %v978
        %v1871 = vpop.f32.mrf.mxu0
        %v1872 = vadd.f32 0.0, %v1871
        %v1873 = vpop.f32.mrf.mxu0
        %v1874 = vadd.f32 0.0, %v1873
        %1875 = vmatmul.bf16.gmra.mxu0 %v1385
        %v1876 = vpop.f32.mrf.mxu0
        %v1877 = vadd.f32 0.0, %v1876
        %v1878 = vpop.f32.mrf.mxu0
        %v1879 = vadd.f32 0.0, %v1878
        %1880 = vmatmul.bf16.gmra.mxu0 %v1792
        %v1881 = vpop.f32.mrf.mxu0
        %v1882 = vadd.f32 0.0, %v1881
        %v1883 = vpop.f32.mrf.mxu0
        %v1884 = vadd.f32 0.0, %v1883
        %1885 = vdwg.mxu0
        %v1886 = vadd.f32 %v1749, %v1807
        %v1887 = vadd.f32 %v1750, %v1809
        %v1888 = vadd.f32 %v1751, %v1812
        %v1889 = vadd.f32 %v1752, %v1814
        %v1890 = vadd.f32 %v1753, %v1817
        %v1891 = vadd.f32 %v1754, %v1819
        %v1892 = vadd.f32 %v1755, %v1822
        %v1893 = vadd.f32 %v1756, %v1824
        %v1894 = vadd.f32 %v1757, %v1827
        %v1895 = vadd.f32 %v1758, %v1829
        %v1896 = vadd.f32 %v1759, %v1832
        %v1897 = vadd.f32 %v1760, %v1834
        %v1898 = vadd.f32 %v1761, %v1837
        %v1899 = vadd.f32 %v1762, %v1839
        %v1900 = vadd.f32 %v1763, %v1842
        %v1901 = vadd.f32 %v1764, %v1844
        %v1902 = vadd.f32 %v1765, %v1847
        %v1903 = vadd.f32 %v1766, %v1849
        %v1904 = vadd.f32 %v1767, %v1852
        %v1905 = vadd.f32 %v1768, %v1854
        %v1906 = vadd.f32 %v1769, %v1857
        %v1907 = vadd.f32 %v1770, %v1859
        %v1908 = vadd.f32 %v1771, %v1862
        %v1909 = vadd.f32 %v1772, %v1864
        %v1910 = vadd.f32 %v1773, %v1867
        %v1911 = vadd.f32 %v1774, %v1869
        %v1912 = vadd.f32 %v1775, %v1872
        %v1913 = vadd.f32 %v1776, %v1874
        %v1914 = vadd.f32 %v1777, %v1877
        %v1915 = vadd.f32 %v1778, %v1879
        %v1916 = vadd.f32 %v1779, %v1882
        %v1917 = vadd.f32 %v1780, %v1884
        %v1918 = vld [vmem:[%s213] sm:$0x1]
        %v1920 = vperm.slane %v1918, 0
        %v1922 = vadd.f32 %v1886, %v1920
        %v1923 = vadd.f32 %v1887, %v1920
        %v1924 = vadd.f32 %v1888, %v1920
        %v1925 = vadd.f32 %v1889, %v1920
        %v1926 = vadd.f32 %v1890, %v1920
        %v1927 = vadd.f32 %v1891, %v1920
        %v1928 = vadd.f32 %v1892, %v1920
        %v1929 = vadd.f32 %v1893, %v1920
        %v1930 = vadd.f32 %v1894, %v1920
        %v1931 = vadd.f32 %v1895, %v1920
        %v1932 = vadd.f32 %v1896, %v1920
        %v1933 = vadd.f32 %v1897, %v1920
        %v1934 = vadd.f32 %v1898, %v1920
        %v1935 = vadd.f32 %v1899, %v1920
        %v1936 = vadd.f32 %v1900, %v1920
        %v1937 = vadd.f32 %v1901, %v1920
        %v1938 = vadd.f32 %v1902, %v1920
        %v1939 = vadd.f32 %v1903, %v1920
        %v1940 = vadd.f32 %v1904, %v1920
        %v1941 = vadd.f32 %v1905, %v1920
        %v1942 = vadd.f32 %v1906, %v1920
        %v1943 = vadd.f32 %v1907, %v1920
        %v1944 = vadd.f32 %v1908, %v1920
        %v1945 = vadd.f32 %v1909, %v1920
        %v1946 = vadd.f32 %v1910, %v1920
        %v1947 = vadd.f32 %v1911, %v1920
        %v1948 = vadd.f32 %v1912, %v1920
        %v1949 = vadd.f32 %v1913, %v1920
        %v1950 = vadd.f32 %v1914, %v1920
        %v1951 = vadd.f32 %v1915, %v1920
        %v1952 = vadd.f32 %v1916, %v1920
        %v1953 = vadd.f32 %v1917, %v1920
        %v1954 = vmax.f32 %v1922, 0.0
        %v1955 = vmax.f32 %v1923, 0.0
        %v1956 = vmax.f32 %v1924, 0.0
        %v1957 = vmax.f32 %v1925, 0.0
        %v1958 = vmax.f32 %v1926, 0.0
        %v1959 = vmax.f32 %v1927, 0.0
        %v1960 = vmax.f32 %v1928, 0.0
        %v1961 = vmax.f32 %v1929, 0.0
        %v1962 = vmax.f32 %v1930, 0.0
        %v1963 = vmax.f32 %v1931, 0.0
        %v1964 = vmax.f32 %v1932, 0.0
        %v1965 = vmax.f32 %v1933, 0.0
        %v1966 = vmax.f32 %v1934, 0.0
        %v1967 = vmax.f32 %v1935, 0.0
        %v1968 = vmax.f32 %v1936, 0.0
        %v1969 = vmax.f32 %v1937, 0.0
        %v1970 = vmax.f32 %v1938, 0.0
        %v1971 = vmax.f32 %v1939, 0.0
        %v1972 = vmax.f32 %v1940, 0.0
        %v1973 = vmax.f32 %v1941, 0.0
        %v1974 = vmax.f32 %v1942, 0.0
        %v1975 = vmax.f32 %v1943, 0.0
        %v1976 = vmax.f32 %v1944, 0.0
        %v1977 = vmax.f32 %v1945, 0.0
        %v1978 = vmax.f32 %v1946, 0.0
        %v1979 = vmax.f32 %v1947, 0.0
        %v1980 = vmax.f32 %v1948, 0.0
        %v1981 = vmax.f32 %v1949, 0.0
        %v1982 = vmax.f32 %v1950, 0.0
        %v1983 = vmax.f32 %v1951, 0.0
        %v1984 = vmax.f32 %v1952, 0.0
        %v1985 = vmax.f32 %v1953, 0.0
        %1986 = vst [vmem:[%s201] sm:$0xff] %v1954
        %1987 = vst [vmem:[%s201 + $0x8] sm:$0xff] %v1955
        %1988 = vst [vmem:[%s201 + $0x10] sm:$0xff] %v1956
        %1989 = vst [vmem:[%s201 + $0x18] sm:$0xff] %v1957
        %1990 = vst [vmem:[%s201 + $0x20] sm:$0xff] %v1958
        %1991 = vst [vmem:[%s201 + $0x28] sm:$0xff] %v1959
        %1992 = vst [vmem:[%s201 + $0x30] sm:$0xff] %v1960
        %1993 = vst [vmem:[%s201 + $0x38] sm:$0xff] %v1961
        %1994 = vst [vmem:[%s201 + $0x40] sm:$0xff] %v1962
        %1995 = vst [vmem:[%s201 + $0x48] sm:$0xff] %v1963
        %1996 = vst [vmem:[%s201 + $0x50] sm:$0xff] %v1964
        %1997 = vst [vmem:[%s201 + $0x58] sm:$0xff] %v1965
        %1998 = vst [vmem:[%s201 + $0x60] sm:$0xff] %v1966
        %1999 = vst [vmem:[%s201 + $0x68] sm:$0xff] %v1967
        %2000 = vst [vmem:[%s201 + $0x70] sm:$0xff] %v1968
        %2001 = vst [vmem:[%s201 + $0x78] sm:$0xff] %v1969
        %2002 = vst [vmem:[%s201 + $0x80] sm:$0xff] %v1970
        %2003 = vst [vmem:[%s201 + $0x88] sm:$0xff] %v1971
        %2004 = vst [vmem:[%s201 + $0x90] sm:$0xff] %v1972
        %2005 = vst [vmem:[%s201 + $0x98] sm:$0xff] %v1973
        %2006 = vst [vmem:[%s201 + $0xa0] sm:$0xff] %v1974
        %2007 = vst [vmem:[%s201 + $0xa8] sm:$0xff] %v1975
        %2008 = vst [vmem:[%s201 + $0xb0] sm:$0xff] %v1976
        %2009 = vst [vmem:[%s201 + $0xb8] sm:$0xff] %v1977
        %2010 = vst [vmem:[%s201 + $0xc0] sm:$0xff] %v1978
        %2011 = vst [vmem:[%s201 + $0xc8] sm:$0xff] %v1979
        %2012 = vst [vmem:[%s201 + $0xd0] sm:$0xff] %v1980
        %2013 = vst [vmem:[%s201 + $0xd8] sm:$0xff] %v1981
        %2014 = vst [vmem:[%s201 + $0xe0] sm:$0xff] %v1982
        %2015 = vst [vmem:[%s201 + $0xe8] sm:$0xff] %v1983
        %2016 = vst [vmem:[%s201 + $0xf0] sm:$0xff] %v1984
        %2017 = vst [vmem:[%s201 + $0xf8] sm:$0xff] %v1985
        %s2018 = sand.u32 %s117, 1
        %s2019 = scalar_lea.sflag [#allocation3], %s2018
        %s2020 = sand.u32 %s117, 1
        %s2021 = smul.addr %s2020, 256
        %s2022 = scalar_lea.vmem [#allocation2], %s2021
        // Predicated region
        $region33: #{tpu_custom_call.1} parent=31 // pred_check
          %p2023 = pneg %p127
        $region34: #{tpu_custom_call.1} parent=31 // pred_check_branch
          %2025 = sbr.rel (%p2023) target = $region36
        $region35: #{tpu_custom_call.1} parent=31 // pred_region
          %2027 = vsyncadd %s2019, 0
          %s2028 = smul.addr %s21, 32
          %s2029 = sadd.s32 %s22, %s2028
          %s2030 = smul.addr %s2029, 8
          %s2031 = scalar_lea.hbm %s3, %s2030
          %s2032 = sshll.u32 %s2022, 4
          %s2033 = int_to_ptr.vmem [resolvable:$true] %s2032
          %s2034 = sshll.u32 %s2031, 4
          %s2035 = int_to_ptr.hbm [resolvable:$true] %s2034
          %2040 = dma.vmem_to_hbm [thread:$0]  %s2033, 4096, %s2035, %s2019, 128, 128, 8
        $region36: #{tpu_custom_call.1} parent=31 // pred_fallthru
          _
      $region32: #{tpu_custom_call.1} parent=5 // pred_fallthru
        _
      %p2041 = scmp.le.s32.totalorder 2, %s12
      // Predicated region
      $region37: #{tpu_custom_call.1} parent=5 // pred_check
        %p2042 = pneg %p2041
      $region38: #{tpu_custom_call.1} parent=5 // pred_check_branch
        %2044 = sbr.rel (%p2042) target = $region40
      $region39: #{tpu_custom_call.1} parent=5 // pred_region
        %s2045 = ssub.s32 %s12, 2
        // Predicated region
        $region41: #{tpu_custom_call.1} parent=39 // pred_check
          %p2046 = pneg %p133
        $region42: #{tpu_custom_call.1} parent=39 // pred_check_branch
          %2048 = sbr.rel (%p2046) target = $region44
        $region43: #{tpu_custom_call.1} parent=39 // pred_region
          %s2049 = sand.u32 %s118, 1
          %s2050 = scalar_lea.sflag [#allocation3], %s2049
          %s2051 = sand.u32 %s118, 1
          %s2052 = smul.addr %s2051, 256
          %s2053 = scalar_lea.vmem [#allocation2], %s2052
          %2055 = dma.done %s2050, 4096
        $region44: #{tpu_custom_call.1} parent=39 // pred_fallthru
          _
      $region40: #{tpu_custom_call.1} parent=5 // pred_fallthru
        _
    $region6: #{tpu_custom_call.1} parent=1 // loop_footer
      %s16 = sadd.s32 1, %s12
    $region7: #{tpu_custom_call.1} parent=1 // loop_footer_branch
      %11 = sbr.rel target = $region3
    $region8: #{tpu_custom_call.1} parent=1 // loop_exit
      _
    %2056 = vsyncpa [#allocation3], 1
    %s2057 = scalar_lea.sflag [#allocation3], 1
    %2058 = vsyncpa %s2057, 1

</llo_original>
